<compile_context>
chip_gen: v6e
topology: v6e:2x2x1
jax: 0.10.0
libtpu: 0.0.40
codegen_flags: <defaults>
</compile_context>

<pallas_src>
import functools

import jax
import jax.numpy as jnp
from jax import lax
from jax.experimental import pallas as pl
from jax.experimental.pallas import tpu as pltpu

# Weight pack layout (stacked (10, C, C) weights / (10, C, 1) biases):
#   0..3 : rgb  attention  [queries, keys, values, reprojection]
#   4..7 : flow attention  [queries, keys, values, reprojection]
#   8..9 : pos_ffn         [w_1, w_2]


def _ctfb_kernel(xr_ref, xf_ref, w_ref, b_ref, o_ref, *, n_heads, hw_valid, use_bf16):
    block_n, C, HW = xr_ref.shape
    hc = C // n_heads
    needs_mask = hw_valid != HW
    mm_dtype = jnp.bfloat16 if use_bf16 else jnp.float32

    # Hoisted once per grid step (JAX does not CSE broadcast_in_dim inside loops).
    lane_valid = None
    if needs_mask:
        # (1, HW) mask; jnp.where broadcasts it over channels (no (C, HW) iota).
        lane_valid = lax.broadcasted_iota(jnp.int32, (1, HW), 1) < hw_valid

    def bias(idx):
        # b_ref is (C, 10): channels on sublanes, conv index on lanes.
        return b_ref[:, idx:idx + 1]                          # (C, 1) f32

    def conv1x1(idx, x):
        # nn.Conv2d(C, C, 1): out[co, p] = sum_ci W[co, ci] * x[ci, p] + b[co]
        w = w_ref[idx].astype(mm_dtype)                       # only the active (C, C) slab
        return jnp.dot(w, x.astype(mm_dtype),
                       preferred_element_type=jnp.float32) + bias(idx)

    def softmax(x, axis):
        # All f32 math; cast to the matmul dtype only AFTER normalization.
        m = jnp.max(x, axis=axis, keepdims=True)
        e = jnp.exp(x - m)
        s = jnp.sum(e, axis=axis, keepdims=True)
        return (e * pl.reciprocal(s, approx=True)).astype(mm_dtype)

    def efficient_attention(x, base):
        # Fused QKV projection: one (3C, C) x (C, HW) matmul (base is a static Python int).
        w3 = w_ref[base:base + 3].reshape(3 * C, C).astype(mm_dtype)
        qkv = jnp.dot(w3, x.astype(mm_dtype),
                      preferred_element_type=jnp.float32)     # (3C, HW) f32
        q = qkv[0 * C:1 * C] + bias(base + 0)                 # (C, HW)
        k = qkv[1 * C:2 * C] + bias(base + 1)
        v = qkv[2 * C:3 * C] + bias(base + 2)

        if needs_mask:
            # Padded lanes must not contribute to the spatial softmax.
            k = jnp.where(lane_valid, k, -1e30)

        k_sm = softmax(k.reshape(n_heads, hc, HW), axis=2)    # softmax over spatial (torch dim=2)
        q_sm = softmax(q.reshape(n_heads, hc, HW), axis=1)    # softmax over head channels (dim=1)
        vh = v.reshape(n_heads, hc, HW).astype(mm_dtype)

        # context^T[h] = V[h] @ K_sm[h]^T  (contract both lane dims; no transposes)
        context_t = lax.dot_general(
            vh, k_sm, (((2,), (2,)), ((0,), (0,))),
            preferred_element_type=jnp.float32)               # (n_heads, hc_v, hc_k)
        # attended[h] = context^T[h] @ Q_sm[h]  (batched matmul)
        attended = lax.dot_general(
            context_t.astype(mm_dtype), q_sm, (((2,), (1,)), ((0,), (0,))),
            preferred_element_type=jnp.float32)               # (n_heads, hc_v, HW)

        agg = attended.reshape(C, HW)                         # heads re-joined, no concat
        return conv1x1(base + 3, agg) + x                     # reprojection + residual (f32)

    def process(nb):
        xr = xr_ref[nb].astype(jnp.float32)                   # (C, HW)
        xf = xf_ref[nb].astype(jnp.float32)                   # (C, HW)
        add_attn = efficient_attention(xr, 0) + efficient_attention(xf, 4)
        # PositionwiseConv: w_2(relu(w_1(x))) + residual  (dropout is identity in eval)
        h1 = jnp.maximum(conv1x1(8, add_attn), 0.0)
        o_ref[nb] = (conv1x1(9, h1) + add_attn).astype(o_ref.dtype)

    if block_n == 1:
        process(0)
    else:
        # fori_loop bounds live ranges per sample (no vreg spills from a static unroll).
        lax.fori_loop(0, block_n, lambda nb, carry: (process(nb), carry)[1], 0)


def _vmem_budget_bytes():
    cap = 128 * 1024 * 1024
    try:
        cap = int(pltpu.get_tpu_info().vmem_capacity_bytes)
    except Exception:
        pass
    # Leave headroom for compiler-internal scratch; ~54 MiB on v7x, 100 MiB on v5e/v6e.
    return min(int(cap * 0.85), 100 * 1024 * 1024)


def _pick_block_n(N, C, HW_pad, budget_bytes):
    weights = 10 * C * C * 4 + C * 128 * 4          # single-buffered weights + lane-padded bias
    live = 12 * C * HW_pad * 4                      # rough in-kernel per-sample working set
    min_steps = min(4, N)                           # keep the pipeline (and megacore) fed
    best = 1
    for nb in range(1, N + 1):
        if N % nb:
            continue
        if N // nb < min_steps:
            break
        io = 6 * nb * C * HW_pad * 4                # (2 in + 1 out) x double-buffered f32
        if weights + live + io <= budget_bytes:
            best = nb
    return best


def _const_spec(shape):
    """Full-array, constant-index BlockSpec; single-buffered when supported."""
    idx_map = lambda b: (0,) * len(shape)
    try:
        return pl.BlockSpec(shape, idx_map, pipeline_mode=pl.Buffered(1))
    except Exception:  # older jax without pipeline_mode / Buffered
        return pl.BlockSpec(shape, idx_map)


def ctfb_pallas(x_rgb, x_flow, w_pack, b_pack, *, n_heads, block_n=None, use_bf16=None):
    # x_rgb / x_flow: (N, C, H, W) NCHW
    N, C, H, Wd = x_rgb.shape
    assert C % n_heads == 0, "channels must be divisible by n_heads"
    HW = H * Wd

    if use_bf16 is None:
        # bf16 matmul operands only in the MXU-bound regime; f32 below (EUP/HBM-bound).
        use_bf16 = C >= 64

    # Lane-dense spatial axis: pad HW to a multiple of 128 only when needed (masked in-kernel).
    HW_pad = max(128, ((HW + 127) // 128) * 128)
    pad = HW_pad - HW

    xr = x_rgb.reshape(N, C, HW)
    xf = x_flow.reshape(N, C, HW)
    if pad:
        xr = jnp.pad(xr, ((0, 0), (0, 0), (0, pad)))
        xf = jnp.pad(xf, ((0, 0), (0, 0), (0, pad)))

    # Biases: (10, C, 1) -> (C, 10) so the lane dim isn't padded 10x in VMEM.
    b_cn = jnp.transpose(b_pack[:, :, 0], (1, 0))

    budget = _vmem_budget_bytes()
    if block_n is None:
        block_n = _pick_block_n(N, C, HW_pad, budget)
    assert N % block_n == 0
    grid = (N // block_n,)

    kernel = functools.partial(_ctfb_kernel, n_heads=n_heads, hw_valid=HW,
                               use_bf16=use_bf16)

    out = pl.pallas_call(
        kernel,
        out_shape=jax.ShapeDtypeStruct((N, C, HW_pad), x_rgb.dtype),
        grid_spec=pltpu.PrefetchScalarGridSpec(
            num_scalar_prefetch=0,
            grid=grid,
            in_specs=[
                pl.BlockSpec((block_n, C, HW_pad), lambda b: (b, 0, 0)),
                pl.BlockSpec((block_n, C, HW_pad), lambda b: (b, 0, 0)),
                _const_spec((10, C, C)),
                _const_spec((C, 10)),
            ],
            out_specs=pl.BlockSpec((block_n, C, HW_pad), lambda b: (b, 0, 0)),
        ),
        compiler_params=pltpu.CompilerParams(
            dimension_semantics=("parallel",),
            vmem_limit_bytes=budget,
        ),
    )(xr, xf, w_pack, b_cn)

    if pad:
        out = out[:, :, :HW]
    return out.reshape(N, C, H, Wd)


def ctfb_reference(x_rgb, x_flow, w_pack, b_pack, *, n_heads):
    """Pure-JAX reference mirroring the PyTorch forward."""
    N, C, H, Wd = x_rgb.shape
    HW = H * Wd

    def conv1x1(idx, x):  # x: (N, C, HW)
        return jnp.einsum("oc,ncp->nop", w_pack[idx], x) + b_pack[idx][None, :, :]

    def eff_attn(x, base):
        q = conv1x1(base + 0, x)
        k = conv1x1(base + 1, x)
        v = conv1x1(base + 2, x)
        hc = C // n_heads
        heads = []
        for h in range(n_heads):
            sl = slice(h * hc, (h + 1) * hc)
            k_sm = jax.nn.softmax(k[:, sl, :], axis=2)
            q_sm = jax.nn.softmax(q[:, sl, :], axis=1)
            v_h = v[:, sl, :]
            context = jnp.einsum("nkp,nvp->nkv", k_sm, v_h)
            attended = jnp.einsum("nkv,nkp->nvp", context, q_sm)
            heads.append(attended)
        agg = jnp.concatenate(heads, axis=1)
        return conv1x1(base + 3, agg) + x

    xr = x_rgb.reshape(N, C, HW)
    xf = x_flow.reshape(N, C, HW)
    add = eff_attn(xr, 0) + eff_attn(xf, 4)
    h1 = jnp.maximum(conv1x1(8, add), 0.0)
    out = conv1x1(9, h1) + add
    return out.reshape(N, C, H, Wd)


if __name__ == "__main__":
    key = jax.random.PRNGKey(0)
    k_xr, k_xf, k_w, k_b = jax.random.split(key, 4)

    # Small shapes consistent with the module (hc = C / n_heads = 8 keeps reshapes free views).
    N, C, H, Wd = 8, 16, 16, 16
    n_heads = 2

    x_rgb = jax.random.normal(k_xr, (N, C, H, Wd), dtype=jnp.float32)
    x_flow = jax.random.normal(k_xf, (N, C, H, Wd), dtype=jnp.float32)
    # Deterministic synthetic parameters (10 stacked 1x1-conv weights + biases).
    w_pack = jax.random.normal(k_w, (10, C, C), dtype=jnp.float32) * 0.2
    b_pack = jax.random.normal(k_b, (10, C, 1), dtype=jnp.float32) * 0.05

    ref = ctfb_reference(x_rgb, x_flow, w_pack, b_pack, n_heads=n_heads)

    # 1) Default path at small C: f32 matmuls, block_n=2 -> grid=(4,), fori_loop over samples.
    out = jax.block_until_ready(ctfb_pallas(x_rgb, x_flow, w_pack, b_pack, n_heads=n_heads))
    assert out.shape == (N, C, H, Wd)
    # Slightly loosened tolerance: softmax denominators use the EUP approx reciprocal.
    assert jnp.allclose(out, ref, atol=2e-3, rtol=2e-3), "f32 path mismatch vs JAX reference"

    # 2) bf16 matmul-operand path (production default for C >= 64); looser tolerance.
    out_bf16 = jax.block_until_ready(
        ctfb_pallas(x_rgb, x_flow, w_pack, b_pack, n_heads=n_heads, use_bf16=True))
    assert jnp.allclose(out_bf16, ref, atol=1e-1, rtol=1e-1), "bf16 path mismatch vs reference"

    # 3) Non-128-multiple spatial (exercises the masked K-softmax and block_n == 1 paths).
    N2, H2, W2 = 2, 10, 10
    x_rgb2 = jax.random.normal(k_xr, (N2, C, H2, W2), dtype=jnp.float32)
    x_flow2 = jax.random.normal(k_xf, (N2, C, H2, W2), dtype=jnp.float32)
    ref2 = ctfb_reference(x_rgb2, x_flow2, w_pack, b_pack, n_heads=n_heads)
    out2 = jax.block_until_ready(
        ctfb_pallas(x_rgb2, x_flow2, w_pack, b_pack, n_heads=n_heads))
    assert out2.shape == (N2, C, H2, W2)
    assert jnp.allclose(out2, ref2, atol=2e-3, rtol=2e-3), "masked path mismatch vs reference"

    print("KERNEL_OK")
</pallas_src>

<mosaic_0001>
module attributes {stable_mosaic.version = 11 : i64} {
  func.func @_ctfb_kernel(%arg0: i32, %arg1: memref<2x16x256xf32, #tpu.memory_space<vmem>>, %arg2: memref<2x16x256xf32, #tpu.memory_space<vmem>>, %arg3: memref<10x16x16xf32, #tpu.memory_space<vmem>>, %arg4: memref<16x10xf32, #tpu.memory_space<vmem>>, %arg5: memref<2x16x256xf32, #tpu.memory_space<vmem>>) attributes {dimension_semantics = [#tpu.dimension_semantics<parallel>], iteration_bounds = array<i64: 4>, scalar_prefetch = 0 : i64, scratch_operands = 0 : i64, tpu.core_type = #tpu.core_type<tc>, window_params = [{transform_indices = @transform_0, window_bounds = array<i64: 2, 16, 256>}, {transform_indices = @transform_1, window_bounds = array<i64: 2, 16, 256>}, {pipeline_mode = #tpu.pipeline_mode<synchronous>, transform_indices = @transform_2, window_bounds = array<i64: 10, 16, 16>}, {pipeline_mode = #tpu.pipeline_mode<synchronous>, transform_indices = @transform_3, window_bounds = array<i64: 16, 10>}, {transform_indices = @transform_4, window_bounds = array<i64: 2, 16, 256>}]} {
    %c0_i32 = arith.constant 0 : i32
    %c2_i32 = arith.constant 2 : i32
    %0 = arith.addi %c0_i32, %c2_i32 : i32
    %c1_i32 = arith.constant 1 : i32
    scf.for %arg6 = %c0_i32 to %0 step %c1_i32  : i32 {
      %1 = arith.index_cast %arg6 : i32 to index
      %c0 = arith.constant 0 : index
      %c0_1 = arith.constant 0 : index
      %2 = vector.load %arg1[%1, %c0, %c0_1] : memref<2x16x256xf32, #tpu.memory_space<vmem>>, vector<1x16x256xf32>
      %3 = vector.shape_cast %2 : vector<1x16x256xf32> to vector<16x256xf32>
      %4 = arith.index_cast %arg6 : i32 to index
      %c0_2 = arith.constant 0 : index
      %c0_3 = arith.constant 0 : index
      %5 = vector.load %arg2[%4, %c0_2, %c0_3] : memref<2x16x256xf32, #tpu.memory_space<vmem>>, vector<1x16x256xf32>
      %6 = vector.shape_cast %5 : vector<1x16x256xf32> to vector<16x256xf32>
      %c0_4 = arith.constant 0 : index
      %c0_5 = arith.constant 0 : index
      %c0_6 = arith.constant 0 : index
      %7 = vector.load %arg3[%c0_4, %c0_5, %c0_6] : memref<10x16x16xf32, #tpu.memory_space<vmem>>, vector<3x16x16xf32>
      %8 = vector.shape_cast %7 : vector<3x16x16xf32> to vector<48x16xf32>
      %cst = arith.constant dense<0.000000e+00> : vector<48x256xf32>
      %9 = tpu.matmul %8, %3, %cst {dimension_numbers = #tpu.dot_dimension_numbers<[1], [0], [0], [1], [0, 0, 1, 1], [], []>} : vector<48x16xf32>, vector<16x256xf32>, vector<48x256xf32> -> vector<48x256xf32>
      %10 = vector.extract_strided_slice %9 {offsets = [0, 0], sizes = [16, 256], strides = [1, 1]} : vector<48x256xf32> to vector<16x256xf32>
      %c0_7 = arith.constant 0 : index
      %c0_8 = arith.constant 0 : index
      %11 = vector.load %arg4[%c0_7, %c0_8] : memref<16x10xf32, #tpu.memory_space<vmem>>, vector<16x1xf32>
      %12 = vector.broadcast %11 : vector<16x1xf32> to vector<16x256xf32>
      %13 = arith.addf %10, %12 : vector<16x256xf32>
      %14 = vector.extract_strided_slice %9 {offsets = [16, 0], sizes = [16, 256], strides = [1, 1]} : vector<48x256xf32> to vector<16x256xf32>
      %c0_9 = arith.constant 0 : index
      %c1 = arith.constant 1 : index
      %15 = vector.load %arg4[%c0_9, %c1] : memref<16x10xf32, #tpu.memory_space<vmem>>, vector<16x1xf32>
      %16 = vector.broadcast %15 : vector<16x1xf32> to vector<16x256xf32>
      %17 = arith.addf %14, %16 : vector<16x256xf32>
      %18 = vector.extract_strided_slice %9 {offsets = [32, 0], sizes = [16, 256], strides = [1, 1]} : vector<48x256xf32> to vector<16x256xf32>
      %c0_10 = arith.constant 0 : index
      %c2 = arith.constant 2 : index
      %19 = vector.load %arg4[%c0_10, %c2] : memref<16x10xf32, #tpu.memory_space<vmem>>, vector<16x1xf32>
      %20 = vector.broadcast %19 : vector<16x1xf32> to vector<16x256xf32>
      %21 = arith.addf %18, %20 : vector<16x256xf32>
      %22 = vector.shape_cast %17 : vector<16x256xf32> to vector<2x8x256xf32>
      %cst_11 = arith.constant dense<0xFF800000> : vector<2x8xf32>
      %23 = vector.multi_reduction <maximumf>, %22, %cst_11 [2] : vector<2x8x256xf32> to vector<2x8xf32>
      %24 = vector.shape_cast %23 : vector<2x8xf32> to vector<2x8x1xf32>
      %25 = vector.broadcast %24 : vector<2x8x1xf32> to vector<2x8x256xf32>
      %26 = arith.subf %22, %25 : vector<2x8x256xf32>
      %27 = math.exp %26 : vector<2x8x256xf32>
      %cst_12 = arith.constant dense<0.000000e+00> : vector<2x8xf32>
      %28 = vector.multi_reduction <add>, %27, %cst_12 [2] : vector<2x8x256xf32> to vector<2x8xf32>
      %29 = vector.shape_cast %28 : vector<2x8xf32> to vector<2x8x1xf32>
      %30 = tpu.reciprocal %29 {approx = true} : vector<2x8x1xf32> -> vector<2x8x1xf32>
      %31 = vector.broadcast %30 : vector<2x8x1xf32> to vector<2x8x256xf32>
      %32 = arith.mulf %27, %31 : vector<2x8x256xf32>
      %33 = vector.shape_cast %13 : vector<16x256xf32> to vector<2x8x256xf32>
      %cst_13 = arith.constant dense<0xFF800000> : vector<2x256xf32>
      %34 = vector.multi_reduction <maximumf>, %33, %cst_13 [1] : vector<2x8x256xf32> to vector<2x256xf32>
      %35 = vector.shape_cast %34 : vector<2x256xf32> to vector<2x1x256xf32>
      %36 = vector.broadcast %35 : vector<2x1x256xf32> to vector<2x8x256xf32>
      %37 = arith.subf %33, %36 : vector<2x8x256xf32>
      %38 = math.exp %37 : vector<2x8x256xf32>
      %cst_14 = arith.constant dense<0.000000e+00> : vector<2x256xf32>
      %39 = vector.multi_reduction <add>, %38, %cst_14 [1] : vector<2x8x256xf32> to vector<2x256xf32>
      %40 = vector.shape_cast %39 : vector<2x256xf32> to vector<2x1x256xf32>
      %41 = tpu.reciprocal %40 {approx = true} : vector<2x1x256xf32> -> vector<2x1x256xf32>
      %42 = vector.broadcast %41 : vector<2x1x256xf32> to vector<2x8x256xf32>
      %43 = arith.mulf %38, %42 : vector<2x8x256xf32>
      %44 = vector.shape_cast %21 : vector<16x256xf32> to vector<2x8x256xf32>
      %cst_15 = arith.constant dense<0.000000e+00> : vector<2x8x8xf32>
      %45 = tpu.matmul %44, %32, %cst_15 {dimension_numbers = #tpu.dot_dimension_numbers<[2], [2], [1], [1], [0, 0, 0, 1, 1, 1], [0], [0]>} : vector<2x8x256xf32>, vector<2x8x256xf32>, vector<2x8x8xf32> -> vector<2x8x8xf32>
      %cst_16 = arith.constant dense<0.000000e+00> : vector<2x8x256xf32>
      %46 = tpu.matmul %45, %43, %cst_16 {dimension_numbers = #tpu.dot_dimension_numbers<[2], [1], [1], [2], [0, 0, 0, 1, 1, 2], [0], [0]>} : vector<2x8x8xf32>, vector<2x8x256xf32>, vector<2x8x256xf32> -> vector<2x8x256xf32>
      %47 = vector.shape_cast %46 : vector<2x8x256xf32> to vector<16x256xf32>
      %c3 = arith.constant 3 : index
      %c0_17 = arith.constant 0 : index
      %c0_18 = arith.constant 0 : index
      %48 = vector.load %arg3[%c3, %c0_17, %c0_18] : memref<10x16x16xf32, #tpu.memory_space<vmem>>, vector<1x16x16xf32>
      %49 = vector.shape_cast %48 : vector<1x16x16xf32> to vector<16x16xf32>
      %cst_19 = arith.constant dense<0.000000e+00> : vector<16x256xf32>
      %50 = tpu.matmul %49, %47, %cst_19 {dimension_numbers = #tpu.dot_dimension_numbers<[1], [0], [0], [1], [0, 0, 1, 1], [], []>} : vector<16x16xf32>, vector<16x256xf32>, vector<16x256xf32> -> vector<16x256xf32>
      %c0_20 = arith.constant 0 : index
      %c3_21 = arith.constant 3 : index
      %51 = vector.load %arg4[%c0_20, %c3_21] : memref<16x10xf32, #tpu.memory_space<vmem>>, vector<16x1xf32>
      %52 = vector.broadcast %51 : vector<16x1xf32> to vector<16x256xf32>
      %53 = arith.addf %50, %52 : vector<16x256xf32>
      %54 = arith.addf %53, %3 : vector<16x256xf32>
      %c4 = arith.constant 4 : index
      %c0_22 = arith.constant 0 : index
      %c0_23 = arith.constant 0 : index
      %55 = vector.load %arg3[%c4, %c0_22, %c0_23] : memref<10x16x16xf32, #tpu.memory_space<vmem>>, vector<3x16x16xf32>
      %56 = vector.shape_cast %55 : vector<3x16x16xf32> to vector<48x16xf32>
      %cst_24 = arith.constant dense<0.000000e+00> : vector<48x256xf32>
      %57 = tpu.matmul %56, %6, %cst_24 {dimension_numbers = #tpu.dot_dimension_numbers<[1], [0], [0], [1], [0, 0, 1, 1], [], []>} : vector<48x16xf32>, vector<16x256xf32>, vector<48x256xf32> -> vector<48x256xf32>
      %58 = vector.extract_strided_slice %57 {offsets = [0, 0], sizes = [16, 256], strides = [1, 1]} : vector<48x256xf32> to vector<16x256xf32>
      %c0_25 = arith.constant 0 : index
      %c4_26 = arith.constant 4 : index
      %59 = vector.load %arg4[%c0_25, %c4_26] : memref<16x10xf32, #tpu.memory_space<vmem>>, vector<16x1xf32>
      %60 = vector.broadcast %59 : vector<16x1xf32> to vector<16x256xf32>
      %61 = arith.addf %58, %60 : vector<16x256xf32>
      %62 = vector.extract_strided_slice %57 {offsets = [16, 0], sizes = [16, 256], strides = [1, 1]} : vector<48x256xf32> to vector<16x256xf32>
      %c0_27 = arith.constant 0 : index
      %c5 = arith.constant 5 : index
      %63 = vector.load %arg4[%c0_27, %c5] : memref<16x10xf32, #tpu.memory_space<vmem>>, vector<16x1xf32>
      %64 = vector.broadcast %63 : vector<16x1xf32> to vector<16x256xf32>
      %65 = arith.addf %62, %64 : vector<16x256xf32>
      %66 = vector.extract_strided_slice %57 {offsets = [32, 0], sizes = [16, 256], strides = [1, 1]} : vector<48x256xf32> to vector<16x256xf32>
      %c0_28 = arith.constant 0 : index
      %c6 = arith.constant 6 : index
      %67 = vector.load %arg4[%c0_28, %c6] : memref<16x10xf32, #tpu.memory_space<vmem>>, vector<16x1xf32>
      %68 = vector.broadcast %67 : vector<16x1xf32> to vector<16x256xf32>
      %69 = arith.addf %66, %68 : vector<16x256xf32>
      %70 = vector.shape_cast %65 : vector<16x256xf32> to vector<2x8x256xf32>
      %cst_29 = arith.constant dense<0xFF800000> : vector<2x8xf32>
      %71 = vector.multi_reduction <maximumf>, %70, %cst_29 [2] : vector<2x8x256xf32> to vector<2x8xf32>
      %72 = vector.shape_cast %71 : vector<2x8xf32> to vector<2x8x1xf32>
      %73 = vector.broadcast %72 : vector<2x8x1xf32> to vector<2x8x256xf32>
      %74 = arith.subf %70, %73 : vector<2x8x256xf32>
      %75 = math.exp %74 : vector<2x8x256xf32>
      %cst_30 = arith.constant dense<0.000000e+00> : vector<2x8xf32>
      %76 = vector.multi_reduction <add>, %75, %cst_30 [2] : vector<2x8x256xf32> to vector<2x8xf32>
      %77 = vector.shape_cast %76 : vector<2x8xf32> to vector<2x8x1xf32>
      %78 = tpu.reciprocal %77 {approx = true} : vector<2x8x1xf32> -> vector<2x8x1xf32>
      %79 = vector.broadcast %78 : vector<2x8x1xf32> to vector<2x8x256xf32>
      %80 = arith.mulf %75, %79 : vector<2x8x256xf32>
      %81 = vector.shape_cast %61 : vector<16x256xf32> to vector<2x8x256xf32>
      %cst_31 = arith.constant dense<0xFF800000> : vector<2x256xf32>
      %82 = vector.multi_reduction <maximumf>, %81, %cst_31 [1] : vector<2x8x256xf32> to vector<2x256xf32>
      %83 = vector.shape_cast %82 : vector<2x256xf32> to vector<2x1x256xf32>
      %84 = vector.broadcast %83 : vector<2x1x256xf32> to vector<2x8x256xf32>
      %85 = arith.subf %81, %84 : vector<2x8x256xf32>
      %86 = math.exp %85 : vector<2x8x256xf32>
      %cst_32 = arith.constant dense<0.000000e+00> : vector<2x256xf32>
      %87 = vector.multi_reduction <add>, %86, %cst_32 [1] : vector<2x8x256xf32> to vector<2x256xf32>
      %88 = vector.shape_cast %87 : vector<2x256xf32> to vector<2x1x256xf32>
      %89 = tpu.reciprocal %88 {approx = true} : vector<2x1x256xf32> -> vector<2x1x256xf32>
      %90 = vector.broadcast %89 : vector<2x1x256xf32> to vector<2x8x256xf32>
      %91 = arith.mulf %86, %90 : vector<2x8x256xf32>
      %92 = vector.shape_cast %69 : vector<16x256xf32> to vector<2x8x256xf32>
      %cst_33 = arith.constant dense<0.000000e+00> : vector<2x8x8xf32>
      %93 = tpu.matmul %92, %80, %cst_33 {dimension_numbers = #tpu.dot_dimension_numbers<[2], [2], [1], [1], [0, 0, 0, 1, 1, 1], [0], [0]>} : vector<2x8x256xf32>, vector<2x8x256xf32>, vector<2x8x8xf32> -> vector<2x8x8xf32>
      %cst_34 = arith.constant dense<0.000000e+00> : vector<2x8x256xf32>
      %94 = tpu.matmul %93, %91, %cst_34 {dimension_numbers = #tpu.dot_dimension_numbers<[2], [1], [1], [2], [0, 0, 0, 1, 1, 2], [0], [0]>} : vector<2x8x8xf32>, vector<2x8x256xf32>, vector<2x8x256xf32> -> vector<2x8x256xf32>
      %95 = vector.shape_cast %94 : vector<2x8x256xf32> to vector<16x256xf32>
      %c7 = arith.constant 7 : index
      %c0_35 = arith.constant 0 : index
      %c0_36 = arith.constant 0 : index
      %96 = vector.load %arg3[%c7, %c0_35, %c0_36] : memref<10x16x16xf32, #tpu.memory_space<vmem>>, vector<1x16x16xf32>
      %97 = vector.shape_cast %96 : vector<1x16x16xf32> to vector<16x16xf32>
      %cst_37 = arith.constant dense<0.000000e+00> : vector<16x256xf32>
      %98 = tpu.matmul %97, %95, %cst_37 {dimension_numbers = #tpu.dot_dimension_numbers<[1], [0], [0], [1], [0, 0, 1, 1], [], []>} : vector<16x16xf32>, vector<16x256xf32>, vector<16x256xf32> -> vector<16x256xf32>
      %c0_38 = arith.constant 0 : index
      %c7_39 = arith.constant 7 : index
      %99 = vector.load %arg4[%c0_38, %c7_39] : memref<16x10xf32, #tpu.memory_space<vmem>>, vector<16x1xf32>
      %100 = vector.broadcast %99 : vector<16x1xf32> to vector<16x256xf32>
      %101 = arith.addf %98, %100 : vector<16x256xf32>
      %102 = arith.addf %101, %6 : vector<16x256xf32>
      %103 = arith.addf %54, %102 : vector<16x256xf32>
      %c8 = arith.constant 8 : index
      %c0_40 = arith.constant 0 : index
      %c0_41 = arith.constant 0 : index
      %104 = vector.load %arg3[%c8, %c0_40, %c0_41] : memref<10x16x16xf32, #tpu.memory_space<vmem>>, vector<1x16x16xf32>
      %105 = vector.shape_cast %104 : vector<1x16x16xf32> to vector<16x16xf32>
      %cst_42 = arith.constant dense<0.000000e+00> : vector<16x256xf32>
      %106 = tpu.matmul %105, %103, %cst_42 {dimension_numbers = #tpu.dot_dimension_numbers<[1], [0], [0], [1], [0, 0, 1, 1], [], []>} : vector<16x16xf32>, vector<16x256xf32>, vector<16x256xf32> -> vector<16x256xf32>
      %c0_43 = arith.constant 0 : index
      %c8_44 = arith.constant 8 : index
      %107 = vector.load %arg4[%c0_43, %c8_44] : memref<16x10xf32, #tpu.memory_space<vmem>>, vector<16x1xf32>
      %108 = vector.broadcast %107 : vector<16x1xf32> to vector<16x256xf32>
      %109 = arith.addf %106, %108 : vector<16x256xf32>
      %cst_45 = arith.constant 0.000000e+00 : f32
      %110 = vector.broadcast %cst_45 : f32 to vector<16x256xf32>
      %111 = arith.maximumf %109, %110 : vector<16x256xf32>
      %c9 = arith.constant 9 : index
      %c0_46 = arith.constant 0 : index
      %c0_47 = arith.constant 0 : index
      %112 = vector.load %arg3[%c9, %c0_46, %c0_47] : memref<10x16x16xf32, #tpu.memory_space<vmem>>, vector<1x16x16xf32>
      %113 = vector.shape_cast %112 : vector<1x16x16xf32> to vector<16x16xf32>
      %cst_48 = arith.constant dense<0.000000e+00> : vector<16x256xf32>
      %114 = tpu.matmul %113, %111, %cst_48 {dimension_numbers = #tpu.dot_dimension_numbers<[1], [0], [0], [1], [0, 0, 1, 1], [], []>} : vector<16x16xf32>, vector<16x256xf32>, vector<16x256xf32> -> vector<16x256xf32>
      %c0_49 = arith.constant 0 : index
      %c9_50 = arith.constant 9 : index
      %115 = vector.load %arg4[%c0_49, %c9_50] : memref<16x10xf32, #tpu.memory_space<vmem>>, vector<16x1xf32>
      %116 = vector.broadcast %115 : vector<16x1xf32> to vector<16x256xf32>
      %117 = arith.addf %114, %116 : vector<16x256xf32>
      %118 = arith.addf %117, %103 : vector<16x256xf32>
      %119 = arith.index_cast %arg6 : i32 to index
      %c0_51 = arith.constant 0 : index
      %c0_52 = arith.constant 0 : index
      %120 = vector.load %arg5[%119, %c0_51, %c0_52] : memref<2x16x256xf32, #tpu.memory_space<vmem>>, vector<1x16x256xf32>
      %121 = vector.shape_cast %120 : vector<1x16x256xf32> to vector<16x256xf32>
      %122 = vector.shape_cast %118 : vector<16x256xf32> to vector<1x16x256xf32>
      tpu.vector_store %arg5[%119, %c0_51, %c0_52], %122 {strides = array<i32>} : memref<2x16x256xf32, #tpu.memory_space<vmem>>, vector<1x16x256xf32>,
    }
    %c2_i32_0 = arith.constant 2 : i32
    return
  }
  func.func @transform_0(%arg0: i32) -> (i32, i32, i32) {
    %c0_i32 = arith.constant 0 : i32
    %c0_i32_0 = arith.constant 0 : i32
    %c0_i32_1 = arith.constant 0 : i32
    return %arg0, %c0_i32, %c0_i32_0 : i32, i32, i32
  }
  func.func @transform_1(%arg0: i32) -> (i32, i32, i32) {
    %c0_i32 = arith.constant 0 : i32
    %c0_i32_0 = arith.constant 0 : i32
    %c0_i32_1 = arith.constant 0 : i32
    return %arg0, %c0_i32, %c0_i32_0 : i32, i32, i32
  }
  func.func @transform_2(%arg0: i32) -> (i32, i32, i32) {
    %c0_i32 = arith.constant 0 : i32
    %c0_i32_0 = arith.constant 0 : i32
    %c0_i32_1 = arith.constant 0 : i32
    %c0_i32_2 = arith.constant 0 : i32
    return %c0_i32, %c0_i32_0, %c0_i32_1 : i32, i32, i32
  }
  func.func @transform_3(%arg0: i32) -> (i32, i32) {
    %c0_i32 = arith.constant 0 : i32
    %c0_i32_0 = arith.constant 0 : i32
    %c0_i32_1 = arith.constant 0 : i32
    return %c0_i32, %c0_i32_0 : i32, i32
  }
  func.func @transform_4(%arg0: i32) -> (i32, i32, i32) {
    %c0_i32 = arith.constant 0 : i32
    %c0_i32_0 = arith.constant 0 : i32
    %c0_i32_1 = arith.constant 0 : i32
    return %arg0, %c0_i32, %c0_i32_0 : i32, i32, i32
  }
}

</mosaic_0001>

<llo_original>
// kernel: tpu_custom_call.1
$region0: #{tpu_custom_call.1}
  #allocation0 [shape = 'u32[]', space=smem, size = 0x4, offset = 0x4, fixed_abs, tag = 'smem constant byte address 0x4 - core index']
  #allocation1 [shape = 'u32[144,128]{1,0:T(1,128)}', space=vmem, size = 0x12000, scoped, tag = 'internal scratch']
  %s0 = inlined_call_operand.hbm [shape: f32[8,16,256], index: 0, kind: input, shape index: {}]
  %s1 = inlined_call_operand.hbm [shape: f32[8,16,256], index: 1, kind: input, shape index: {}]
  %s2 = inlined_call_operand.hbm [shape: f32[10,16,16], index: 2, kind: input, shape index: {}]
  %s3 = inlined_call_operand.hbm [shape: f32[16,10], index: 3, kind: input, shape index: {}]
  %s4 = inlined_call_operand.hbm [shape: f32[8,16,256], index: 4, kind: output, shape index: {}]
  %s5 = sld [smem:[#allocation0]]
  $region72: #{tpu_custom_call.1} parent=0
    _
  %s7 = ssub.s32 1, %s5
  %s8 = scalar_select 0, %s7, %s5
  $region1: #{tpu_custom_call.1} parent=0
    #allocation2 [shape = 'u8[65536]{0}', space=vmem, size = 0x10000, scoped, tag = 'input window, operand 0']
    #allocation3 [shape = 's32[2]{0}', space=sflag, size = 0x8, scoped, tag = 'scoped memory for tpu_custom_call.1']
    #allocation4 [shape = 's32[2]{0}', space=sflag, size = 0x8, scoped, tag = 'scoped memory for tpu_custom_call.1']
    #allocation5 [shape = 'u8[65536]{0}', space=vmem, size = 0x10000, scoped, tag = 'input window, operand 1']
    #allocation6 [shape = 's32[2]{0}', space=sflag, size = 0x8, scoped, tag = 'scoped memory for tpu_custom_call.1']
    #allocation7 [shape = 'u8[81920]{0}', space=vmem, size = 0x14000, scoped, tag = 'input window, operand 2, single buffered']
    #allocation8 [shape = 'u8[8192]{0}', space=vmem, size = 0x2000, scoped, tag = 'input window, operand 3, single buffered']
    #allocation9 [shape = 's32[1]{0}', space=sflag, size = 0x4, scoped, tag = 'scoped memory for tpu_custom_call.1']
    #allocation10 [shape = 'u8[65536]{0}', space=vmem, size = 0x10000, scoped, tag = 'output window, operand 0']
    %9 = vsyncpa [#allocation3], 0
    %s10 = scalar_lea.sflag [#allocation3], 1
    %11 = vsyncpa %s10, 0
    %12 = vsyncpa [#allocation6], 0
    %s13 = scalar_lea.sflag [#allocation6], 1
    %14 = vsyncpa %s13, 0
    %15 = vsyncpa [#allocation9], 0
    %16 = vsyncpa [#allocation4], 0
    %s17 = scalar_lea.sflag [#allocation4], 1
    %18 = vsyncpa %s17, 0
    loop: start=0, step=1, limit=6
    $region2: #{tpu_custom_call.1} parent=1 // loop_pre_header
      _
    $region3: #{tpu_custom_call.1} parent=1 // loop_header
      %s20 = sphi 0, %s24
      %p21 = scmp.ge.s32.totalorder %s20, 6
      %s30 = sphi 0, %s32
      %s33 = sphi 0, %s30
      %s34 = sphi 0, %s33
      %s50 = sphi 0, %s34
      %s56 = sphi 0, %s58
      %s59 = sphi 0, %s56
      %s60 = sphi 0, %s59
      %s76 = sphi 0, %s60
      %s80 = sphi 0, %s80
      %s82 = sphi 0, %s80
      %s83 = sphi 0, %s82
      %s97 = sphi 0, %s83
      %s101 = sphi 0, %s101
      %s103 = sphi 0, %s101
      %s104 = sphi 0, %s103
      %s118 = sphi 0, %s104
      %s124 = sphi 0, %s126
      %s127 = sphi 0, %s124
      %s128 = sphi 0, %s127
      %s144 = sphi 0, %s128
    $region4: #{tpu_custom_call.1} parent=1 // loop_header_branch
      %23 = sbr.rel (%p21) target = $region8
    $region5: #{tpu_custom_call.1} parent=1 // loop_body
      %s25 = ssub.s32 %s20, 1
      %s26 = ssub.s32 %s20, 2
      %s27 = sadd.s32 %s20, 1
      %s28 = ssub.s32 %s20, %s27
      %p29 = scmp.eq.s32.totalorder %s28, 0
      %s31 = sadd.s32 %s30, 1
      %s32 = scalar_select %p29, %s30, %s31
      %p35 = pneg %p29
      %p36 = scmp.eq.s32.totalorder %s20, 3
      %p37 = por %p35, %p36
      %p38 = scmp.ne.s32.totalorder %s30, %s33
      %p39 = scmp.eq.s32.totalorder %s20, 0
      %p40 = por %p38, %p39
      %p41 = scmp.ne.s32.totalorder %s30, %s33
      %p42 = scmp.eq.s32.totalorder %s25, 3
      %p43 = por %p41, %p42
      %p44 = scmp.ne.s32.totalorder %s33, %s34
      %p45 = scmp.eq.s32.totalorder %s25, 0
      %p46 = por %p44, %p45
      %p47 = scmp.ne.s32.totalorder %s33, %s34
      %p48 = scmp.eq.s32.totalorder %s26, 3
      %p49 = por %p47, %p48
      %p51 = scmp.ne.s32.totalorder %s34, %s50
      %p52 = scmp.eq.s32.totalorder %s26, 0
      %p53 = por %p51, %p52
      %s54 = ssub.s32 %s20, %s27
      %p55 = scmp.eq.s32.totalorder %s54, 0
      %s57 = sadd.s32 %s56, 1
      %s58 = scalar_select %p55, %s56, %s57
      %p61 = pneg %p55
      %p62 = scmp.eq.s32.totalorder %s20, 3
      %p63 = por %p61, %p62
      %p64 = scmp.ne.s32.totalorder %s56, %s59
      %p65 = scmp.eq.s32.totalorder %s20, 0
      %p66 = por %p64, %p65
      %p67 = scmp.ne.s32.totalorder %s56, %s59
      %p68 = scmp.eq.s32.totalorder %s25, 3
      %p69 = por %p67, %p68
      %p70 = scmp.ne.s32.totalorder %s59, %s60
      %p71 = scmp.eq.s32.totalorder %s25, 0
      %p72 = por %p70, %p71
      %p73 = scmp.ne.s32.totalorder %s59, %s60
      %p74 = scmp.eq.s32.totalorder %s26, 3
      %p75 = por %p73, %p74
      %p77 = scmp.ne.s32.totalorder %s60, %s76
      %p78 = scmp.eq.s32.totalorder %s26, 0
      %p79 = por %p77, %p78
      %s81 = sadd.s32 %s80, 1
      %p84 = scmp.eq.s32.totalorder %s20, 3
      %p85 = scmp.ne.s32.totalorder %s80, %s82
      %p86 = scmp.eq.s32.totalorder %s20, 0
      %p87 = por %p85, %p86
      %p88 = scmp.ne.s32.totalorder %s80, %s82
      %p89 = scmp.eq.s32.totalorder %s25, 3
      %p90 = por %p88, %p89
      %p91 = scmp.ne.s32.totalorder %s82, %s83
      %p92 = scmp.eq.s32.totalorder %s25, 0
      %p93 = por %p91, %p92
      %p94 = scmp.ne.s32.totalorder %s82, %s83
      %p95 = scmp.eq.s32.totalorder %s26, 3
      %p96 = por %p94, %p95
      %p98 = scmp.ne.s32.totalorder %s83, %s97
      %p99 = scmp.eq.s32.totalorder %s26, 0
      %p100 = por %p98, %p99
      %s102 = sadd.s32 %s101, 1
      %p105 = scmp.eq.s32.totalorder %s20, 3
      %p106 = scmp.ne.s32.totalorder %s101, %s103
      %p107 = scmp.eq.s32.totalorder %s20, 0
      %p108 = por %p106, %p107
      %p109 = scmp.ne.s32.totalorder %s101, %s103
      %p110 = scmp.eq.s32.totalorder %s25, 3
      %p111 = por %p109, %p110
      %p112 = scmp.ne.s32.totalorder %s103, %s104
      %p113 = scmp.eq.s32.totalorder %s25, 0
      %p114 = por %p112, %p113
      %p115 = scmp.ne.s32.totalorder %s103, %s104
      %p116 = scmp.eq.s32.totalorder %s26, 3
      %p117 = por %p115, %p116
      %p119 = scmp.ne.s32.totalorder %s104, %s118
      %p120 = scmp.eq.s32.totalorder %s26, 0
      %p121 = por %p119, %p120
      %s122 = ssub.s32 %s20, %s27
      %p123 = scmp.eq.s32.totalorder %s122, 0
      %s125 = sadd.s32 %s124, 1
      %s126 = scalar_select %p123, %s124, %s125
      %p129 = pneg %p123
      %p130 = scmp.eq.s32.totalorder %s20, 3
      %p131 = por %p129, %p130
      %p132 = scmp.ne.s32.totalorder %s124, %s127
      %p133 = scmp.eq.s32.totalorder %s20, 0
      %p134 = por %p132, %p133
      %p135 = scmp.ne.s32.totalorder %s124, %s127
      %p136 = scmp.eq.s32.totalorder %s25, 3
      %p137 = por %p135, %p136
      %p138 = scmp.ne.s32.totalorder %s127, %s128
      %p139 = scmp.eq.s32.totalorder %s25, 0
      %p140 = por %p138, %p139
      %p141 = scmp.ne.s32.totalorder %s127, %s128
      %p142 = scmp.eq.s32.totalorder %s26, 3
      %p143 = por %p141, %p142
      %p145 = scmp.ne.s32.totalorder %s128, %s144
      %p146 = scmp.eq.s32.totalorder %s26, 0
      %p147 = por %p145, %p146
      %p148 = scmp.le.s32.totalorder 1, %s20
      %p149 = scmp.lt.s32.totalorder %s20, 5
      %p150 = pnand %p148, %p149
      %p151 = pneg %p150
      // Predicated region
      $region9: #{tpu_custom_call.1} parent=5 // pred_check
        _
      $region10: #{tpu_custom_call.1} parent=5 // pred_check_branch
        %153 = sbr.rel (%p150) target = $region12
      $region11: #{tpu_custom_call.1} parent=5 // pred_region
        %s154 = ssub.s32 %s20, 1
        // Predicated region
        $region13: #{tpu_custom_call.1} parent=11 // pred_check
          %p155 = pneg %p93
        $region14: #{tpu_custom_call.1} parent=11 // pred_check_branch
          %157 = sbr.rel (%p155) target = $region16
        $region15: #{tpu_custom_call.1} parent=11 // pred_region
          %s159 = ssub.s32 2560, 2560
          %160 = vsyncadd [#allocation6], %s159
          %s161 = sshll.u32 [#allocation7], 4
          %s162 = int_to_ptr.vmem [resolvable:$true] %s161
          %167 = dma.hbm_to_vmem [thread:$0]  %s2, 2560, %s162, [#allocation6], 128, 128, 8
        $region16: #{tpu_custom_call.1} parent=11 // pred_fallthru
          _
        // Predicated region
        $region17: #{tpu_custom_call.1} parent=11 // pred_check
          %p168 = pneg %p114
        $region18: #{tpu_custom_call.1} parent=11 // pred_check_branch
          %170 = sbr.rel (%p168) target = $region20
        $region19: #{tpu_custom_call.1} parent=11 // pred_region
          %s172 = ssub.s32 256, 256
          %173 = vsyncadd [#allocation9], %s172
          %s174 = sshll.u32 [#allocation8], 4
          %s175 = int_to_ptr.vmem [resolvable:$true] %s174
          %180 = dma.hbm_to_vmem [thread:$0]  %s3, 256, %s175, [#allocation9], 128, 128, 8
        $region20: #{tpu_custom_call.1} parent=11 // pred_fallthru
          _
      $region12: #{tpu_custom_call.1} parent=5 // pred_fallthru
        _
      %p181 = scmp.lt.s32.totalorder %s20, 4
      // Predicated region
      $region21: #{tpu_custom_call.1} parent=5 // pred_check
        %p182 = pneg %p181
      $region22: #{tpu_custom_call.1} parent=5 // pred_check_branch
        %184 = sbr.rel (%p182) target = $region24
      $region23: #{tpu_custom_call.1} parent=5 // pred_region
        // Predicated region
        $region25: #{tpu_custom_call.1} parent=23 // pred_check
          %p185 = pneg %p40
        $region26: #{tpu_custom_call.1} parent=23 // pred_check_branch
          %187 = sbr.rel (%p185) target = $region28
        $region27: #{tpu_custom_call.1} parent=23 // pred_region
          %s188 = sand.u32 %s30, 1
          %s189 = scalar_lea.sflag [#allocation3], %s188
          %s190 = sand.u32 %s30, 1
          %s191 = smul.addr %s190, 64
          %s192 = scalar_lea.vmem [#allocation2], %s191
          %s193 = smul.u32 2, %s20
          %s195 = ssub.s32 1024, 1024
          %196 = vsyncadd %s189, %s195
          %s197 = smul.addr %s193, 4
          %s198 = smul.addr %s197, 128
          %s199 = scalar_lea.hbm %s0, %s198
          %s200 = sshll.u32 %s192, 4
          %s201 = int_to_ptr.vmem [resolvable:$true] %s200
          %206 = dma.hbm_to_vmem [thread:$0]  %s199, 1024, %s201, %s189, 256, 256, 16
        $region28: #{tpu_custom_call.1} parent=23 // pred_fallthru
          _
        // Predicated region
        $region29: #{tpu_custom_call.1} parent=23 // pred_check
          %p207 = pneg %p66
        $region30: #{tpu_custom_call.1} parent=23 // pred_check_branch
          %209 = sbr.rel (%p207) target = $region32
        $region31: #{tpu_custom_call.1} parent=23 // pred_region
          %s210 = sand.u32 %s20, 1
          %s211 = scalar_lea.sflag [#allocation6], %s210
          %s212 = sand.u32 %s56, 1
          %s213 = smul.addr %s212, 64
          %s214 = scalar_lea.vmem [#allocation5], %s213
          %s215 = smul.u32 2, %s20
          %s217 = ssub.s32 1024, 1024
          %218 = vsyncadd %s211, %s217
          %s219 = smul.addr %s215, 4
          %s220 = smul.addr %s219, 128
          %s221 = scalar_lea.hbm %s1, %s220
          %s222 = sshll.u32 %s214, 4
          %s223 = int_to_ptr.vmem [resolvable:$true] %s222
          %228 = dma.hbm_to_vmem [thread:$0]  %s221, 1024, %s223, %s211, 256, 256, 16
        $region32: #{tpu_custom_call.1} parent=23 // pred_fallthru
          _
      $region24: #{tpu_custom_call.1} parent=5 // pred_fallthru
        _
      %p229 = scmp.le.s32.totalorder 1, %s20
      %p230 = scmp.lt.s32.totalorder %s20, 5
      %p231 = pnand %p229, %p230
      %p232 = pneg %p231
      // Predicated region
      $region33: #{tpu_custom_call.1} parent=5 // pred_check
        _
      $region34: #{tpu_custom_call.1} parent=5 // pred_check_branch
        %234 = sbr.rel (%p231) target = $region36
      $region35: #{tpu_custom_call.1} parent=5 // pred_region
        %s235 = ssub.s32 %s20, 1
        %s236 = sand.u32 %s33, 1
        %s237 = scalar_lea.sflag [#allocation3], %s236
        %s238 = sand.u32 %s33, 1
        %s239 = smul.addr %s238, 64
        %s240 = scalar_lea.vmem [#allocation2], %s239
        // Predicated region
        $region37: #{tpu_custom_call.1} parent=35 // pred_check
          %p241 = pneg %p46
        $region38: #{tpu_custom_call.1} parent=35 // pred_check_branch
          %243 = sbr.rel (%p241) target = $region40
        $region39: #{tpu_custom_call.1} parent=35 // pred_region
          %244 = dma.done %s237, 1024
        $region40: #{tpu_custom_call.1} parent=35 // pred_fallthru
          _
        %s245 = sand.u32 %s25, 1
        %s246 = scalar_lea.sflag [#allocation6], %s245
        %s247 = sand.u32 %s59, 1
        %s248 = smul.addr %s247, 64
        %s249 = scalar_lea.vmem [#allocation5], %s248
        // Predicated region
        $region41: #{tpu_custom_call.1} parent=35 // pred_check
          %p250 = pneg %p72
        $region42: #{tpu_custom_call.1} parent=35 // pred_check_branch
          %252 = sbr.rel (%p250) target = $region44
        $region43: #{tpu_custom_call.1} parent=35 // pred_region
          %253 = dma.done %s246, 1024
        $region44: #{tpu_custom_call.1} parent=35 // pred_fallthru
          _
        // Predicated region
        $region45: #{tpu_custom_call.1} parent=35 // pred_check
          %p254 = pneg %p93
        $region46: #{tpu_custom_call.1} parent=35 // pred_check_branch
          %256 = sbr.rel (%p254) target = $region48
        $region47: #{tpu_custom_call.1} parent=35 // pred_region
          %257 = dma.done [#allocation6], 2560
        $region48: #{tpu_custom_call.1} parent=35 // pred_fallthru
          _
        // Predicated region
        $region49: #{tpu_custom_call.1} parent=35 // pred_check
          %p258 = pneg %p114
        $region50: #{tpu_custom_call.1} parent=35 // pred_check_branch
          %260 = sbr.rel (%p258) target = $region52
        $region51: #{tpu_custom_call.1} parent=35 // pred_region
          %261 = dma.done [#allocation9], 256
        $region52: #{tpu_custom_call.1} parent=35 // pred_fallthru
          _
        %s262 = sand.u32 %s33, 1
        %s263 = scalar_lea.sflag [#allocation3], %s262
        %s264 = sand.u32 %s33, 1
        %s265 = smul.addr %s264, 64
        %s266 = scalar_lea.vmem [#allocation2], %s265
        %p267 = pneg %p46
        %p268 = pneg %p43
        %s269 = sand.u32 %s25, 1
        %s270 = scalar_lea.sflag [#allocation6], %s269
        %s271 = sand.u32 %s59, 1
        %s272 = smul.addr %s271, 64
        %s273 = scalar_lea.vmem [#allocation5], %s272
        %p274 = pneg %p72
        %p275 = pneg %p69
        %p276 = pneg %p93
        %p277 = pneg %p90
        %p278 = pneg %p114
        %p279 = pneg %p111
        %p280 = pneg %p140
        %p281 = pneg %p137
        %s282 = sand.u32 %s127, 1
        %s283 = scalar_lea.sflag [#allocation4], %s282
        %s284 = sand.u32 %s127, 1
        %s285 = smul.addr %s284, 64
        %s286 = scalar_lea.vmem [#allocation10], %s285
        %s287 = smul.u32 2, %s25
        %s288 = smul.u32 2, %s25
        %s289 = smul.u32 2, %s25
        loop: start=0, step=1, limit=2
        $region53: #{tpu_custom_call.1} parent=35 // loop_pre_header
          _
        $region54: #{tpu_custom_call.1} parent=35 // loop_header
          %s291 = sphi 0, %s295
          %p292 = scmp.ge.s32.totalorder %s291, 2
        $region55: #{tpu_custom_call.1} parent=35 // loop_header_branch
          %294 = sbr.rel (%p292) target = $region59
        $region56: #{tpu_custom_call.1} parent=35 // loop_body
          %s296 = smul.u32 %s291, 4
          %s297 = smul.addr %s296, 8
          %s298 = scalar_lea.vmem %s240, %s297 [#allocation2]
          %v299 = vld [vmem:[%s298] sm:$0xff]
          %v300 = vld [vmem:[%s298 + $0x8] sm:$0xff]
          %v301 = vld [vmem:[%s298 + $0x10] sm:$0xff]
          %v302 = vld [vmem:[%s298 + $0x18] sm:$0xff]
          %s303 = smul.addr %s296, 8
          %s304 = scalar_lea.vmem %s249, %s303 [#allocation5]
          %v305 = vld [vmem:[%s304] sm:$0xff]
          %v306 = vld [vmem:[%s304 + $0x8] sm:$0xff]
          %v307 = vld [vmem:[%s304 + $0x10] sm:$0xff]
          %v308 = vld [vmem:[%s304 + $0x18] sm:$0xff]
          %v309 = vld [vmem:[#allocation7] sm:$0xff]
          %v310 = vld [vmem:[#allocation7 + $0x8] sm:$0xff]
          %v311 = vld [vmem:[#allocation7 + $0x10] sm:$0xff]
          %v312 = vld [vmem:[#allocation7 + $0x18] sm:$0xff]
          %v313 = vld [vmem:[#allocation7 + $0x20] sm:$0xff]
          %v314 = vld [vmem:[#allocation7 + $0x28] sm:$0xff]
          %vm315 = vcmask 130048
          %v317 = vsel %vm315, %v309, 0
          %v320 = vsel %vm315, %v310, 0
          %v323 = vsel %vm315, %v311, 0
          %v326 = vsel %vm315, %v312, 0
          %v329 = vsel %vm315, %v313, 0
          %v332 = vsel %vm315, %v314, 0
          %334 = vmatprep.subr.mxu0 0.0
          %335 = vmatpush1.msra.mxu0 0.0
          %336 = vmatprep.subr.mxu0 0.0
          %337 = vmatpush1.msra.mxu0 0.0
          %338 = vmatprep.subr.mxu0 0.0
          %339 = vmatpush1.msra.mxu0 0.0
          %340 = vmatprep.subr.mxu0 0.0
          %341 = vmatpush1.msra.mxu0 0.0
          %342 = vmatprep.subr.mxu0 0.0
          %343 = vmatpush1.msra.mxu0 0.0
          %344 = vmatprep.subr.mxu0 0.0
          %345 = vmatpush1.msra.mxu0 0.0
          %346 = vmatprep.subr.mxu0 0.0
          %347 = vmatpush1.msra.mxu0 0.0
          %348 = vmatprep.subr.mxu0 0.0
          %349 = vmatpush1.msra.mxu0 0.0
          %350 = vmatprep.subr.mxu0 0.0
          %351 = vmatpush1.msra.mxu0 0.0
          %352 = vmatprep.subr.mxu0 0.0
          %353 = vmatpush1.msra.mxu0 0.0
          %354 = vmatprep.subr.mxu0 0.0
          %355 = vmatpush1.msra.mxu0 0.0
          %356 = vmatprep.subr.mxu0 0.0
          %357 = vmatpush1.msra.mxu0 0.0
          %358 = vmatprep.subr.mxu0 0.0
          %359 = vmatpush1.msra.mxu0 0.0
          %360 = vmatprep.subr.mxu0 0.0
          %361 = vmatpush1.msra.mxu0 0.0
          %362 = vmatprep.subr.mxu0 %v302
          %363 = vmatpush1.msra.mxu0 %v301
          %364 = vmatprep.subr.mxu0 %v300
          %365 = vmatpush1.msra.mxu0 %v299
          %366 = vmatprep.subr.mxu0 0.0
          %367 = vmatpush2.msra.mxu0 0.0
          %368 = vmatprep.subr.mxu0 0.0
          %369 = vmatpush2.msra.mxu0 0.0
          %370 = vmatprep.subr.mxu0 0.0
          %371 = vmatpush2.msra.mxu0 0.0
          %372 = vmatprep.subr.mxu0 0.0
          %373 = vmatpush2.msra.mxu0 0.0
          %374 = vmatprep.subr.mxu0 0.0
          %375 = vmatpush2.msra.mxu0 0.0
          %376 = vmatprep.subr.mxu0 0.0
          %377 = vmatpush2.msra.mxu0 0.0
          %378 = vmatprep.subr.mxu0 0.0
          %379 = vmatpush2.msra.mxu0 0.0
          %380 = vmatprep.subr.mxu0 0.0
          %381 = vmatpush2.msra.mxu0 0.0
          %382 = vmatprep.subr.mxu0 0.0
          %383 = vmatpush2.msra.mxu0 0.0
          %384 = vmatprep.subr.mxu0 0.0
          %385 = vmatpush2.msra.mxu0 0.0
          %386 = vmatprep.subr.mxu0 0.0
          %387 = vmatpush2.msra.mxu0 0.0
          %388 = vmatprep.subr.mxu0 0.0
          %389 = vmatpush2.msra.mxu0 0.0
          %390 = vmatprep.subr.mxu0 0.0
          %391 = vmatpush2.msra.mxu0 0.0
          %392 = vmatprep.subr.mxu0 0.0
          %393 = vmatpush2.msra.mxu0 0.0
          %394 = vmatprep.subr.mxu0 0.0
          %395 = vmatpush2.msra.mxu0 0.0
          %396 = vmatprep.subr.mxu0 0.0
          %397 = vmatpush2.msra.mxu0 0.0
          %398 = vmatprep.mubr.f32.mxu0 0.0
          %399 = vmatmul.mubr.f32.gmra.mxu0 %v317
          %v400 = vpop.f32.mrf.mxu0
          %v401 = vadd.f32 0.0, %v400
          %v402 = vpop.f32.mrf.mxu0
          %v403 = vadd.f32 0.0, %v402
          %404 = vmatprep.mubr.f32.mxu0 0.0
          %405 = vmatmul.mubr.f32.gmra.mxu0 %v320
          %v406 = vpop.f32.mrf.mxu0
          %v407 = vadd.f32 0.0, %v406
          %v408 = vpop.f32.mrf.mxu0
          %v409 = vadd.f32 0.0, %v408
          %410 = vmatprep.mubr.f32.mxu0 0.0
          %411 = vmatmul.mubr.f32.gmra.mxu0 %v323
          %v412 = vpop.f32.mrf.mxu0
          %v413 = vadd.f32 0.0, %v412
          %v414 = vpop.f32.mrf.mxu0
          %v415 = vadd.f32 0.0, %v414
          %416 = vmatprep.mubr.f32.mxu0 0.0
          %417 = vmatmul.mubr.f32.gmra.mxu0 %v326
          %v418 = vpop.f32.mrf.mxu0
          %v419 = vadd.f32 0.0, %v418
          %v420 = vpop.f32.mrf.mxu0
          %v421 = vadd.f32 0.0, %v420
          %422 = vmatprep.mubr.f32.mxu0 0.0
          %423 = vmatmul.mubr.f32.gmra.mxu0 %v329
          %v424 = vpop.f32.mrf.mxu0
          %v425 = vadd.f32 0.0, %v424
          %v426 = vpop.f32.mrf.mxu0
          %v427 = vadd.f32 0.0, %v426
          %428 = vmatprep.mubr.f32.mxu0 0.0
          %429 = vmatmul.mubr.f32.gmra.mxu0 %v332
          %v430 = vpop.f32.mrf.mxu0
          %v431 = vadd.f32 0.0, %v430
          %v432 = vpop.f32.mrf.mxu0
          %v433 = vadd.f32 0.0, %v432
          %434 = vdwg.mxu0
          %v435 = vld [vmem:[#allocation8] sm:$0xff]
          %v436 = vld [vmem:[#allocation8 + $0x8] sm:$0xff]
          %438 = vset.pattern.permute.xlu0 0
          %439 = vperm.xlu0 %438, %v435
          %v440 = vpop.permute.xlu0 %439
          %443 = vset.pattern.permute.xlu0 0
          %444 = vperm.xlu0 %443, %v436
          %v445 = vpop.permute.xlu0 %444
          %v447 = vadd.f32 %v401, %v440
          %v448 = vadd.f32 %v403, %v440
          %v449 = vadd.f32 %v407, %v445
          %v450 = vadd.f32 %v409, %v445
          %451 = vset.pattern.permute.xlu0 1
          %452 = vperm.xlu0 %451, %v435
          %v453 = vpop.permute.xlu0 %452
          %455 = vset.pattern.permute.xlu0 1
          %456 = vperm.xlu0 %455, %v436
          %v457 = vpop.permute.xlu0 %456
          %v459 = vadd.f32 %v413, %v453
          %v460 = vadd.f32 %v415, %v453
          %v461 = vadd.f32 %v419, %v457
          %v462 = vadd.f32 %v421, %v457
          %463 = vset.pattern.permute.xlu0 2
          %464 = vperm.xlu0 %463, %v435
          %v465 = vpop.permute.xlu0 %464
          %467 = vset.pattern.permute.xlu0 2
          %468 = vperm.xlu0 %467, %v436
          %v469 = vpop.permute.xlu0 %468
          %v471 = vadd.f32 %v425, %v465
          %v472 = vadd.f32 %v427, %v465
          %v473 = vadd.f32 %v431, %v469
          %v474 = vadd.f32 %v433, %v469
          %v475 = vmax.f32 %v459, %v460
          %476 = vmax.xlane.f32.xlu0 %v475
          %v477 = vpop.xlane.xlu0 %476
          %v478 = vmax.f32 %v461, %v462
          %479 = vmax.xlane.f32.xlu0 %v478
          %v480 = vpop.xlane.xlu0 %479
          %v481 = vsub.f32 %v459, %v477
          %v482 = vsub.f32 %v460, %v477
          %v483 = vsub.f32 %v461, %v480
          %v484 = vsub.f32 %v462, %v480
          %v485 = vmul.f32 %v481, 1.442695
          %v486 = vpow.pop %v485
          %v487 = vmul.f32 %v482, 1.442695
          %v488 = vpow.pop %v487
          %v489 = vmul.f32 %v483, 1.442695
          %v490 = vpow.pop %v489
          %v491 = vmul.f32 %v484, 1.442695
          %v492 = vpow.pop %v491
          %v493 = vadd.f32 %v486, %v488
          %494 = vadd.xlane.f32.xlu0 %v493
          %v495 = vpop.xlane.xlu0 %494
          %v496 = vadd.f32 %v490, %v492
          %497 = vadd.xlane.f32.xlu0 %v496
          %v498 = vpop.xlane.xlu0 %497
          %v499 = vrcp.pop %v495
          %v500 = vrcp.pop %v498
          %v501 = vmul.f32 %v486, %v499
          %v502 = vmul.f32 %v488, %v499
          %v503 = vmul.f32 %v490, %v500
          %v504 = vmul.f32 %v492, %v500
          %v505 = vrot.slane %v447, 4
          %v506 = vmax.f32 %v447, %v505
          %v507 = vrot.slane %v506, 2
          %v508 = vmax.f32 %v506, %v507
          %v509 = vrot.slane %v508, 1
          %v510 = vmax.f32 %v508, %v509
          %v511 = vrot.slane %v448, 4
          %v512 = vmax.f32 %v448, %v511
          %v513 = vrot.slane %v512, 2
          %v514 = vmax.f32 %v512, %v513
          %v515 = vrot.slane %v514, 1
          %v516 = vmax.f32 %v514, %v515
          %v517 = vrot.slane %v449, 4
          %v518 = vmax.f32 %v449, %v517
          %v519 = vrot.slane %v518, 2
          %v520 = vmax.f32 %v518, %v519
          %v521 = vrot.slane %v520, 1
          %v522 = vmax.f32 %v520, %v521
          %v523 = vrot.slane %v450, 4
          %v524 = vmax.f32 %v450, %v523
          %v525 = vrot.slane %v524, 2
          %v526 = vmax.f32 %v524, %v525
          %v527 = vrot.slane %v526, 1
          %v528 = vmax.f32 %v526, %v527
          %v529 = vsub.f32 %v447, %v510
          %v530 = vsub.f32 %v448, %v516
          %v531 = vsub.f32 %v449, %v522
          %v532 = vsub.f32 %v450, %v528
          %v533 = vmul.f32 %v529, 1.442695
          %v534 = vpow.pop %v533
          %v535 = vmul.f32 %v530, 1.442695
          %v536 = vpow.pop %v535
          %v537 = vmul.f32 %v531, 1.442695
          %v538 = vpow.pop %v537
          %v539 = vmul.f32 %v532, 1.442695
          %v540 = vpow.pop %v539
          %v541 = vrot.slane %v534, 4
          %v542 = vadd.f32 %v534, %v541
          %v543 = vrot.slane %v542, 2
          %v544 = vadd.f32 %v542, %v543
          %v545 = vrot.slane %v544, 1
          %v546 = vadd.f32 %v544, %v545
          %v547 = vrot.slane %v536, 4
          %v548 = vadd.f32 %v536, %v547
          %v549 = vrot.slane %v548, 2
          %v550 = vadd.f32 %v548, %v549
          %v551 = vrot.slane %v550, 1
          %v552 = vadd.f32 %v550, %v551
          %v553 = vrot.slane %v538, 4
          %v554 = vadd.f32 %v538, %v553
          %v555 = vrot.slane %v554, 2
          %v556 = vadd.f32 %v554, %v555
          %v557 = vrot.slane %v556, 1
          %v558 = vadd.f32 %v556, %v557
          %v559 = vrot.slane %v540, 4
          %v560 = vadd.f32 %v540, %v559
          %v561 = vrot.slane %v560, 2
          %v562 = vadd.f32 %v560, %v561
          %v563 = vrot.slane %v562, 1
          %v564 = vadd.f32 %v562, %v563
          %v565 = vrcp.pop %v546
          %v566 = vrcp.pop %v552
          %v567 = vrcp.pop %v558
          %v568 = vrcp.pop %v564
          %v569 = vmul.f32 %v534, %v565
          %v570 = vmul.f32 %v536, %v566
          %v571 = vmul.f32 %v538, %v567
          %v572 = vmul.f32 %v540, %v568
          %573 = vmatprep.subr.mxu0 0.0
          %574 = vmatpush1.xpose.msra.mxu0 0.0
          %575 = vmatprep.subr.mxu0 0.0
          %576 = vmatpush1.xpose.msra.mxu0 0.0
          %577 = vmatprep.subr.mxu0 0.0
          %578 = vmatpush1.xpose.msra.mxu0 0.0
          %579 = vmatprep.subr.mxu0 0.0
          %580 = vmatpush1.xpose.msra.mxu0 0.0
          %581 = vmatprep.subr.mxu0 0.0
          %582 = vmatpush1.xpose.msra.mxu0 0.0
          %583 = vmatprep.subr.mxu0 0.0
          %584 = vmatpush1.xpose.msra.mxu0 0.0
          %585 = vmatprep.subr.mxu0 0.0
          %586 = vmatpush1.xpose.msra.mxu0 0.0
          %587 = vmatprep.subr.mxu0 0.0
          %588 = vmatpush1.xpose.msra.mxu0 0.0
          %589 = vmatprep.subr.mxu0 0.0
          %590 = vmatpush1.xpose.msra.mxu0 0.0
          %591 = vmatprep.subr.mxu0 0.0
          %592 = vmatpush1.xpose.msra.mxu0 0.0
          %593 = vmatprep.subr.mxu0 0.0
          %594 = vmatpush1.xpose.msra.mxu0 0.0
          %595 = vmatprep.subr.mxu0 0.0
          %596 = vmatpush1.xpose.msra.mxu0 0.0
          %597 = vmatprep.subr.mxu0 0.0
          %598 = vmatpush1.xpose.msra.mxu0 0.0
          %599 = vmatprep.subr.mxu0 0.0
          %600 = vmatpush1.xpose.msra.mxu0 0.0
          %601 = vmatprep.subr.mxu0 0.0
          %602 = vmatpush1.xpose.msra.mxu0 0.0
          %603 = vmatprep.subr.mxu0 %v502
          %604 = vmatpush1.xpose.msra.mxu0 %v501
          %605 = vmatprep.subr.mxu0 0.0
          %606 = vmatpush2.xpose.msra.mxu0 0.0
          %607 = vmatprep.subr.mxu0 0.0
          %608 = vmatpush2.xpose.msra.mxu0 0.0
          %609 = vmatprep.subr.mxu0 0.0
          %610 = vmatpush2.xpose.msra.mxu0 0.0
          %611 = vmatprep.subr.mxu0 0.0
          %612 = vmatpush2.xpose.msra.mxu0 0.0
          %613 = vmatprep.subr.mxu0 0.0
          %614 = vmatpush2.xpose.msra.mxu0 0.0
          %615 = vmatprep.subr.mxu0 0.0
          %616 = vmatpush2.xpose.msra.mxu0 0.0
          %617 = vmatprep.subr.mxu0 0.0
          %618 = vmatpush2.xpose.msra.mxu0 0.0
          %619 = vmatprep.subr.mxu0 0.0
          %620 = vmatpush2.xpose.msra.mxu0 0.0
          %621 = vmatprep.subr.mxu0 0.0
          %622 = vmatpush2.xpose.msra.mxu0 0.0
          %623 = vmatprep.subr.mxu0 0.0
          %624 = vmatpush2.xpose.msra.mxu0 0.0
          %625 = vmatprep.subr.mxu0 0.0
          %626 = vmatpush2.xpose.msra.mxu0 0.0
          %627 = vmatprep.subr.mxu0 0.0
          %628 = vmatpush2.xpose.msra.mxu0 0.0
          %629 = vmatprep.subr.mxu0 0.0
          %630 = vmatpush2.xpose.msra.mxu0 0.0
          %631 = vmatprep.subr.mxu0 0.0
          %632 = vmatpush2.xpose.msra.mxu0 0.0
          %633 = vmatprep.subr.mxu0 0.0
          %634 = vmatpush2.xpose.msra.mxu0 0.0
          %635 = vmatprep.subr.mxu0 0.0
          %636 = vmatpush2.xpose.msra.mxu0 0.0
          %637 = vmatprep.mubr.f32.mxu0 %v472
          %638 = vmatmul.mubr.f32.gmra.mxu0 %v471
          %v639 = vpop.f32.mrf.mxu0
          %v640 = vadd.f32 0.0, %v639
          %v641 = vpop.f32.mrf.mxu0
          %642 = vdwg.mxu0
          %643 = vmatprep.subr.mxu0 0.0
          %644 = vmatpush1.xpose.msra.mxu0 0.0
          %645 = vmatprep.subr.mxu0 0.0
          %646 = vmatpush1.xpose.msra.mxu0 0.0
          %647 = vmatprep.subr.mxu0 0.0
          %648 = vmatpush1.xpose.msra.mxu0 0.0
          %649 = vmatprep.subr.mxu0 0.0
          %650 = vmatpush1.xpose.msra.mxu0 0.0
          %651 = vmatprep.subr.mxu0 0.0
          %652 = vmatpush1.xpose.msra.mxu0 0.0
          %653 = vmatprep.subr.mxu0 0.0
          %654 = vmatpush1.xpose.msra.mxu0 0.0
          %655 = vmatprep.subr.mxu0 0.0
          %656 = vmatpush1.xpose.msra.mxu0 0.0
          %657 = vmatprep.subr.mxu0 0.0
          %658 = vmatpush1.xpose.msra.mxu0 0.0
          %659 = vmatprep.subr.mxu0 0.0
          %660 = vmatpush1.xpose.msra.mxu0 0.0
          %661 = vmatprep.subr.mxu0 0.0
          %662 = vmatpush1.xpose.msra.mxu0 0.0
          %663 = vmatprep.subr.mxu0 0.0
          %664 = vmatpush1.xpose.msra.mxu0 0.0
          %665 = vmatprep.subr.mxu0 0.0
          %666 = vmatpush1.xpose.msra.mxu0 0.0
          %667 = vmatprep.subr.mxu0 0.0
          %668 = vmatpush1.xpose.msra.mxu0 0.0
          %669 = vmatprep.subr.mxu0 0.0
          %670 = vmatpush1.xpose.msra.mxu0 0.0
          %671 = vmatprep.subr.mxu0 0.0
          %672 = vmatpush1.xpose.msra.mxu0 0.0
          %673 = vmatprep.subr.mxu0 %v504
          %674 = vmatpush1.xpose.msra.mxu0 %v503
          %675 = vmatprep.subr.mxu0 0.0
          %676 = vmatpush2.xpose.msra.mxu0 0.0
          %677 = vmatprep.subr.mxu0 0.0
          %678 = vmatpush2.xpose.msra.mxu0 0.0
          %679 = vmatprep.subr.mxu0 0.0
          %680 = vmatpush2.xpose.msra.mxu0 0.0
          %681 = vmatprep.subr.mxu0 0.0
          %682 = vmatpush2.xpose.msra.mxu0 0.0
          %683 = vmatprep.subr.mxu0 0.0
          %684 = vmatpush2.xpose.msra.mxu0 0.0
          %685 = vmatprep.subr.mxu0 0.0
          %686 = vmatpush2.xpose.msra.mxu0 0.0
          %687 = vmatprep.subr.mxu0 0.0
          %688 = vmatpush2.xpose.msra.mxu0 0.0
          %689 = vmatprep.subr.mxu0 0.0
          %690 = vmatpush2.xpose.msra.mxu0 0.0
          %691 = vmatprep.subr.mxu0 0.0
          %692 = vmatpush2.xpose.msra.mxu0 0.0
          %693 = vmatprep.subr.mxu0 0.0
          %694 = vmatpush2.xpose.msra.mxu0 0.0
          %695 = vmatprep.subr.mxu0 0.0
          %696 = vmatpush2.xpose.msra.mxu0 0.0
          %697 = vmatprep.subr.mxu0 0.0
          %698 = vmatpush2.xpose.msra.mxu0 0.0
          %699 = vmatprep.subr.mxu0 0.0
          %700 = vmatpush2.xpose.msra.mxu0 0.0
          %701 = vmatprep.subr.mxu0 0.0
          %702 = vmatpush2.xpose.msra.mxu0 0.0
          %703 = vmatprep.subr.mxu0 0.0
          %704 = vmatpush2.xpose.msra.mxu0 0.0
          %705 = vmatprep.subr.mxu0 0.0
          %706 = vmatpush2.xpose.msra.mxu0 0.0
          %707 = vmatprep.mubr.f32.mxu0 %v474
          %708 = vmatmul.mubr.f32.gmra.mxu0 %v473
          %v709 = vpop.f32.mrf.mxu0
          %v710 = vadd.f32 0.0, %v709
          %v711 = vpop.f32.mrf.mxu0
          %712 = vdwg.mxu0
          %vm713 = vcmask 64512
          %v715 = vsel %vm713, %v640, 0
          %717 = vmatprep.subr.mxu0 0.0
          %718 = vmatpush1.msra.mxu0 0.0
          %719 = vmatprep.subr.mxu0 0.0
          %720 = vmatpush1.msra.mxu0 0.0
          %721 = vmatprep.subr.mxu0 0.0
          %722 = vmatpush1.msra.mxu0 0.0
          %723 = vmatprep.subr.mxu0 0.0
          %724 = vmatpush1.msra.mxu0 0.0
          %725 = vmatprep.subr.mxu0 0.0
          %726 = vmatpush1.msra.mxu0 0.0
          %727 = vmatprep.subr.mxu0 0.0
          %728 = vmatpush1.msra.mxu0 0.0
          %729 = vmatprep.subr.mxu0 0.0
          %730 = vmatpush1.msra.mxu0 0.0
          %731 = vmatprep.subr.mxu0 0.0
          %732 = vmatpush1.msra.mxu0 0.0
          %733 = vmatprep.subr.mxu0 0.0
          %734 = vmatpush1.msra.mxu0 0.0
          %735 = vmatprep.subr.mxu0 0.0
          %736 = vmatpush1.msra.mxu0 0.0
          %737 = vmatprep.subr.mxu0 0.0
          %738 = vmatpush1.msra.mxu0 0.0
          %739 = vmatprep.subr.mxu0 0.0
          %740 = vmatpush1.msra.mxu0 0.0
          %741 = vmatprep.subr.mxu0 0.0
          %742 = vmatpush1.msra.mxu0 0.0
          %743 = vmatprep.subr.mxu0 0.0
          %744 = vmatpush1.msra.mxu0 0.0
          %745 = vmatprep.subr.mxu0 0.0
          %746 = vmatpush1.msra.mxu0 0.0
          %747 = vmatprep.subr.mxu0 %v570
          %748 = vmatpush1.msra.mxu0 %v569
          %749 = vmatprep.subr.mxu0 0.0
          %750 = vmatpush2.msra.mxu0 0.0
          %751 = vmatprep.subr.mxu0 0.0
          %752 = vmatpush2.msra.mxu0 0.0
          %753 = vmatprep.subr.mxu0 0.0
          %754 = vmatpush2.msra.mxu0 0.0
          %755 = vmatprep.subr.mxu0 0.0
          %756 = vmatpush2.msra.mxu0 0.0
          %757 = vmatprep.subr.mxu0 0.0
          %758 = vmatpush2.msra.mxu0 0.0
          %759 = vmatprep.subr.mxu0 0.0
          %760 = vmatpush2.msra.mxu0 0.0
          %761 = vmatprep.subr.mxu0 0.0
          %762 = vmatpush2.msra.mxu0 0.0
          %763 = vmatprep.subr.mxu0 0.0
          %764 = vmatpush2.msra.mxu0 0.0
          %765 = vmatprep.subr.mxu0 0.0
          %766 = vmatpush2.msra.mxu0 0.0
          %767 = vmatprep.subr.mxu0 0.0
          %768 = vmatpush2.msra.mxu0 0.0
          %769 = vmatprep.subr.mxu0 0.0
          %770 = vmatpush2.msra.mxu0 0.0
          %771 = vmatprep.subr.mxu0 0.0
          %772 = vmatpush2.msra.mxu0 0.0
          %773 = vmatprep.subr.mxu0 0.0
          %774 = vmatpush2.msra.mxu0 0.0
          %775 = vmatprep.subr.mxu0 0.0
          %776 = vmatpush2.msra.mxu0 0.0
          %777 = vmatprep.subr.mxu0 0.0
          %778 = vmatpush2.msra.mxu0 0.0
          %779 = vmatprep.subr.mxu0 0.0
          %780 = vmatpush2.msra.mxu0 0.0
          %781 = vmatprep.mubr.f32.mxu0 0.0
          %782 = vmatmul.mubr.f32.gmra.mxu0 %v715
          %v783 = vpop.f32.mrf.mxu0
          %v784 = vadd.f32 0.0, %v783
          %v785 = vpop.f32.mrf.mxu0
          %v786 = vadd.f32 0.0, %v785
          %787 = vdwg.mxu0
          %v789 = vsel %vm713, %v710, 0
          %791 = vmatprep.subr.mxu0 0.0
          %792 = vmatpush1.msra.mxu0 0.0
          %793 = vmatprep.subr.mxu0 0.0
          %794 = vmatpush1.msra.mxu0 0.0
          %795 = vmatprep.subr.mxu0 0.0
          %796 = vmatpush1.msra.mxu0 0.0
          %797 = vmatprep.subr.mxu0 0.0
          %798 = vmatpush1.msra.mxu0 0.0
          %799 = vmatprep.subr.mxu0 0.0
          %800 = vmatpush1.msra.mxu0 0.0
          %801 = vmatprep.subr.mxu0 0.0
          %802 = vmatpush1.msra.mxu0 0.0
          %803 = vmatprep.subr.mxu0 0.0
          %804 = vmatpush1.msra.mxu0 0.0
          %805 = vmatprep.subr.mxu0 0.0
          %806 = vmatpush1.msra.mxu0 0.0
          %807 = vmatprep.subr.mxu0 0.0
          %808 = vmatpush1.msra.mxu0 0.0
          %809 = vmatprep.subr.mxu0 0.0
          %810 = vmatpush1.msra.mxu0 0.0
          %811 = vmatprep.subr.mxu0 0.0
          %812 = vmatpush1.msra.mxu0 0.0
          %813 = vmatprep.subr.mxu0 0.0
          %814 = vmatpush1.msra.mxu0 0.0
          %815 = vmatprep.subr.mxu0 0.0
          %816 = vmatpush1.msra.mxu0 0.0
          %817 = vmatprep.subr.mxu0 0.0
          %818 = vmatpush1.msra.mxu0 0.0
          %819 = vmatprep.subr.mxu0 0.0
          %820 = vmatpush1.msra.mxu0 0.0
          %821 = vmatprep.subr.mxu0 %v572
          %822 = vmatpush1.msra.mxu0 %v571
          %823 = vmatprep.subr.mxu0 0.0
          %824 = vmatpush2.msra.mxu0 0.0
          %825 = vmatprep.subr.mxu0 0.0
          %826 = vmatpush2.msra.mxu0 0.0
          %827 = vmatprep.subr.mxu0 0.0
          %828 = vmatpush2.msra.mxu0 0.0
          %829 = vmatprep.subr.mxu0 0.0
          %830 = vmatpush2.msra.mxu0 0.0
          %831 = vmatprep.subr.mxu0 0.0
          %832 = vmatpush2.msra.mxu0 0.0
          %833 = vmatprep.subr.mxu0 0.0
          %834 = vmatpush2.msra.mxu0 0.0
          %835 = vmatprep.subr.mxu0 0.0
          %836 = vmatpush2.msra.mxu0 0.0
          %837 = vmatprep.subr.mxu0 0.0
          %838 = vmatpush2.msra.mxu0 0.0
          %839 = vmatprep.subr.mxu0 0.0
          %840 = vmatpush2.msra.mxu0 0.0
          %841 = vmatprep.subr.mxu0 0.0
          %842 = vmatpush2.msra.mxu0 0.0
          %843 = vmatprep.subr.mxu0 0.0
          %844 = vmatpush2.msra.mxu0 0.0
          %845 = vmatprep.subr.mxu0 0.0
          %846 = vmatpush2.msra.mxu0 0.0
          %847 = vmatprep.subr.mxu0 0.0
          %848 = vmatpush2.msra.mxu0 0.0
          %849 = vmatprep.subr.mxu0 0.0
          %850 = vmatpush2.msra.mxu0 0.0
          %851 = vmatprep.subr.mxu0 0.0
          %852 = vmatpush2.msra.mxu0 0.0
          %853 = vmatprep.subr.mxu0 0.0
          %854 = vmatpush2.msra.mxu0 0.0
          %855 = vmatprep.mubr.f32.mxu0 0.0
          %856 = vmatmul.mubr.f32.gmra.mxu0 %v789
          %v857 = vpop.f32.mrf.mxu0
          %v858 = vadd.f32 0.0, %v857
          %v859 = vpop.f32.mrf.mxu0
          %v860 = vadd.f32 0.0, %v859
          %861 = vdwg.mxu0
          %s862 = scalar_lea.vmem [#allocation7], 48
          %v863 = vld [vmem:[%s862] sm:$0xff]
          %v864 = vld [vmem:[%s862 + $0x8] sm:$0xff]
          %865 = vset.pattern.permute.xlu0 3
          %866 = vperm.xlu0 %865, %v435
          %v867 = vpop.permute.xlu0 %866
          %869 = vset.pattern.permute.xlu0 3
          %870 = vperm.xlu0 %869, %v436
          %v871 = vpop.permute.xlu0 %870
          %v874 = vsel %vm315, %v863, 0
          %v877 = vsel %vm315, %v864, 0
          %879 = vmatprep.subr.mxu0 0.0
          %880 = vmatpush1.msra.mxu0 0.0
          %881 = vmatprep.subr.mxu0 0.0
          %882 = vmatpush1.msra.mxu0 0.0
          %883 = vmatprep.subr.mxu0 0.0
          %884 = vmatpush1.msra.mxu0 0.0
          %885 = vmatprep.subr.mxu0 0.0
          %886 = vmatpush1.msra.mxu0 0.0
          %887 = vmatprep.subr.mxu0 0.0
          %888 = vmatpush1.msra.mxu0 0.0
          %889 = vmatprep.subr.mxu0 0.0
          %890 = vmatpush1.msra.mxu0 0.0
          %891 = vmatprep.subr.mxu0 0.0
          %892 = vmatpush1.msra.mxu0 0.0
          %893 = vmatprep.subr.mxu0 0.0
          %894 = vmatpush1.msra.mxu0 0.0
          %895 = vmatprep.subr.mxu0 0.0
          %896 = vmatpush1.msra.mxu0 0.0
          %897 = vmatprep.subr.mxu0 0.0
          %898 = vmatpush1.msra.mxu0 0.0
          %899 = vmatprep.subr.mxu0 0.0
          %900 = vmatpush1.msra.mxu0 0.0
          %901 = vmatprep.subr.mxu0 0.0
          %902 = vmatpush1.msra.mxu0 0.0
          %903 = vmatprep.subr.mxu0 0.0
          %904 = vmatpush1.msra.mxu0 0.0
          %905 = vmatprep.subr.mxu0 0.0
          %906 = vmatpush1.msra.mxu0 0.0
          %907 = vmatprep.subr.mxu0 %v860
          %908 = vmatpush1.msra.mxu0 %v858
          %909 = vmatprep.subr.mxu0 %v786
          %910 = vmatpush1.msra.mxu0 %v784
          %911 = vmatprep.subr.mxu0 0.0
          %912 = vmatpush2.msra.mxu0 0.0
          %913 = vmatprep.subr.mxu0 0.0
          %914 = vmatpush2.msra.mxu0 0.0
          %915 = vmatprep.subr.mxu0 0.0
          %916 = vmatpush2.msra.mxu0 0.0
          %917 = vmatprep.subr.mxu0 0.0
          %918 = vmatpush2.msra.mxu0 0.0
          %919 = vmatprep.subr.mxu0 0.0
          %920 = vmatpush2.msra.mxu0 0.0
          %921 = vmatprep.subr.mxu0 0.0
          %922 = vmatpush2.msra.mxu0 0.0
          %923 = vmatprep.subr.mxu0 0.0
          %924 = vmatpush2.msra.mxu0 0.0
          %925 = vmatprep.subr.mxu0 0.0
          %926 = vmatpush2.msra.mxu0 0.0
          %927 = vmatprep.subr.mxu0 0.0
          %928 = vmatpush2.msra.mxu0 0.0
          %929 = vmatprep.subr.mxu0 0.0
          %930 = vmatpush2.msra.mxu0 0.0
          %931 = vmatprep.subr.mxu0 0.0
          %932 = vmatpush2.msra.mxu0 0.0
          %933 = vmatprep.subr.mxu0 0.0
          %934 = vmatpush2.msra.mxu0 0.0
          %935 = vmatprep.subr.mxu0 0.0
          %936 = vmatpush2.msra.mxu0 0.0
          %937 = vmatprep.subr.mxu0 0.0
          %938 = vmatpush2.msra.mxu0 0.0
          %939 = vmatprep.subr.mxu0 0.0
          %940 = vmatpush2.msra.mxu0 0.0
          %941 = vmatprep.subr.mxu0 0.0
          %942 = vmatpush2.msra.mxu0 0.0
          %943 = vmatprep.mubr.f32.mxu0 0.0
          %944 = vmatmul.mubr.f32.gmra.mxu0 %v874
          %v945 = vpop.f32.mrf.mxu0
          %v946 = vadd.f32 %v867, %v945
          %v947 = vpop.f32.mrf.mxu0
          %v948 = vadd.f32 %v867, %v947
          %949 = vmatprep.mubr.f32.mxu0 0.0
          %950 = vmatmul.mubr.f32.gmra.mxu0 %v877
          %v951 = vpop.f32.mrf.mxu0
          %v952 = vadd.f32 %v871, %v951
          %v953 = vpop.f32.mrf.mxu0
          %v954 = vadd.f32 %v871, %v953
          %955 = vdwg.mxu0
          %v956 = vadd.f32 %v946, %v299
          %v957 = vadd.f32 %v948, %v300
          %v958 = vadd.f32 %v952, %v301
          %v959 = vadd.f32 %v954, %v302
          %s960 = scalar_lea.vmem [#allocation7], 64
          %v961 = vld [vmem:[%s960] sm:$0xff]
          %v962 = vld [vmem:[%s960 + $0x8] sm:$0xff]
          %v963 = vld [vmem:[%s960 + $0x10] sm:$0xff]
          %v964 = vld [vmem:[%s960 + $0x18] sm:$0xff]
          %v965 = vld [vmem:[%s960 + $0x20] sm:$0xff]
          %v966 = vld [vmem:[%s960 + $0x28] sm:$0xff]
          %v968 = vsel %vm315, %v961, 0
          %v971 = vsel %vm315, %v962, 0
          %v974 = vsel %vm315, %v963, 0
          %v977 = vsel %vm315, %v964, 0
          %v980 = vsel %vm315, %v965, 0
          %v983 = vsel %vm315, %v966, 0
          %985 = vmatprep.subr.mxu0 0.0
          %986 = vmatpush1.msra.mxu0 0.0
          %987 = vmatprep.subr.mxu0 0.0
          %988 = vmatpush1.msra.mxu0 0.0
          %989 = vmatprep.subr.mxu0 0.0
          %990 = vmatpush1.msra.mxu0 0.0
          %991 = vmatprep.subr.mxu0 0.0
          %992 = vmatpush1.msra.mxu0 0.0
          %993 = vmatprep.subr.mxu0 0.0
          %994 = vmatpush1.msra.mxu0 0.0
          %995 = vmatprep.subr.mxu0 0.0
          %996 = vmatpush1.msra.mxu0 0.0
          %997 = vmatprep.subr.mxu0 0.0
          %998 = vmatpush1.msra.mxu0 0.0
          %999 = vmatprep.subr.mxu0 0.0
          %1000 = vmatpush1.msra.mxu0 0.0
          %1001 = vmatprep.subr.mxu0 0.0
          %1002 = vmatpush1.msra.mxu0 0.0
          %1003 = vmatprep.subr.mxu0 0.0
          %1004 = vmatpush1.msra.mxu0 0.0
          %1005 = vmatprep.subr.mxu0 0.0
          %1006 = vmatpush1.msra.mxu0 0.0
          %1007 = vmatprep.subr.mxu0 0.0
          %1008 = vmatpush1.msra.mxu0 0.0
          %1009 = vmatprep.subr.mxu0 0.0
          %1010 = vmatpush1.msra.mxu0 0.0
          %1011 = vmatprep.subr.mxu0 0.0
          %1012 = vmatpush1.msra.mxu0 0.0
          %1013 = vmatprep.subr.mxu0 %v308
          %1014 = vmatpush1.msra.mxu0 %v307
          %1015 = vmatprep.subr.mxu0 %v306
          %1016 = vmatpush1.msra.mxu0 %v305
          %1017 = vmatprep.subr.mxu0 0.0
          %1018 = vmatpush2.msra.mxu0 0.0
          %1019 = vmatprep.subr.mxu0 0.0
          %1020 = vmatpush2.msra.mxu0 0.0
          %1021 = vmatprep.subr.mxu0 0.0
          %1022 = vmatpush2.msra.mxu0 0.0
          %1023 = vmatprep.subr.mxu0 0.0
          %1024 = vmatpush2.msra.mxu0 0.0
          %1025 = vmatprep.subr.mxu0 0.0
          %1026 = vmatpush2.msra.mxu0 0.0
          %1027 = vmatprep.subr.mxu0 0.0
          %1028 = vmatpush2.msra.mxu0 0.0
          %1029 = vmatprep.subr.mxu0 0.0
          %1030 = vmatpush2.msra.mxu0 0.0
          %1031 = vmatprep.subr.mxu0 0.0
          %1032 = vmatpush2.msra.mxu0 0.0
          %1033 = vmatprep.subr.mxu0 0.0
          %1034 = vmatpush2.msra.mxu0 0.0
          %1035 = vmatprep.subr.mxu0 0.0
          %1036 = vmatpush2.msra.mxu0 0.0
          %1037 = vmatprep.subr.mxu0 0.0
          %1038 = vmatpush2.msra.mxu0 0.0
          %1039 = vmatprep.subr.mxu0 0.0
          %1040 = vmatpush2.msra.mxu0 0.0
          %1041 = vmatprep.subr.mxu0 0.0
          %1042 = vmatpush2.msra.mxu0 0.0
          %1043 = vmatprep.subr.mxu0 0.0
          %1044 = vmatpush2.msra.mxu0 0.0
          %1045 = vmatprep.subr.mxu0 0.0
          %1046 = vmatpush2.msra.mxu0 0.0
          %1047 = vmatprep.subr.mxu0 0.0
          %1048 = vmatpush2.msra.mxu0 0.0
          %1049 = vmatprep.mubr.f32.mxu0 0.0
          %1050 = vmatmul.mubr.f32.gmra.mxu0 %v968
          %v1051 = vpop.f32.mrf.mxu0
          %v1052 = vadd.f32 0.0, %v1051
          %v1053 = vpop.f32.mrf.mxu0
          %v1054 = vadd.f32 0.0, %v1053
          %1055 = vmatprep.mubr.f32.mxu0 0.0
          %1056 = vmatmul.mubr.f32.gmra.mxu0 %v971
          %v1057 = vpop.f32.mrf.mxu0
          %v1058 = vadd.f32 0.0, %v1057
          %v1059 = vpop.f32.mrf.mxu0
          %v1060 = vadd.f32 0.0, %v1059
          %1061 = vmatprep.mubr.f32.mxu0 0.0
          %1062 = vmatmul.mubr.f32.gmra.mxu0 %v974
          %v1063 = vpop.f32.mrf.mxu0
          %v1064 = vadd.f32 0.0, %v1063
          %v1065 = vpop.f32.mrf.mxu0
          %v1066 = vadd.f32 0.0, %v1065
          %1067 = vmatprep.mubr.f32.mxu0 0.0
          %1068 = vmatmul.mubr.f32.gmra.mxu0 %v977
          %v1069 = vpop.f32.mrf.mxu0
          %v1070 = vadd.f32 0.0, %v1069
          %v1071 = vpop.f32.mrf.mxu0
          %v1072 = vadd.f32 0.0, %v1071
          %1073 = vmatprep.mubr.f32.mxu0 0.0
          %1074 = vmatmul.mubr.f32.gmra.mxu0 %v980
          %v1075 = vpop.f32.mrf.mxu0
          %v1076 = vadd.f32 0.0, %v1075
          %v1077 = vpop.f32.mrf.mxu0
          %v1078 = vadd.f32 0.0, %v1077
          %1079 = vmatprep.mubr.f32.mxu0 0.0
          %1080 = vmatmul.mubr.f32.gmra.mxu0 %v983
          %v1081 = vpop.f32.mrf.mxu0
          %v1082 = vadd.f32 0.0, %v1081
          %v1083 = vpop.f32.mrf.mxu0
          %v1084 = vadd.f32 0.0, %v1083
          %1085 = vdwg.mxu0
          %1086 = vset.pattern.permute.xlu0 4
          %1087 = vperm.xlu0 %1086, %v435
          %v1088 = vpop.permute.xlu0 %1087
          %1090 = vset.pattern.permute.xlu0 4
          %1091 = vperm.xlu0 %1090, %v436
          %v1092 = vpop.permute.xlu0 %1091
          %v1094 = vadd.f32 %v1052, %v1088
          %v1095 = vadd.f32 %v1054, %v1088
          %v1096 = vadd.f32 %v1058, %v1092
          %v1097 = vadd.f32 %v1060, %v1092
          %1098 = vset.pattern.permute.xlu0 5
          %1099 = vperm.xlu0 %1098, %v435
          %v1100 = vpop.permute.xlu0 %1099
          %1102 = vset.pattern.permute.xlu0 5
          %1103 = vperm.xlu0 %1102, %v436
          %v1104 = vpop.permute.xlu0 %1103
          %v1106 = vadd.f32 %v1064, %v1100
          %v1107 = vadd.f32 %v1066, %v1100
          %v1108 = vadd.f32 %v1070, %v1104
          %v1109 = vadd.f32 %v1072, %v1104
          %1110 = vset.pattern.permute.xlu0 6
          %1111 = vperm.xlu0 %1110, %v435
          %v1112 = vpop.permute.xlu0 %1111
          %1114 = vset.pattern.permute.xlu0 6
          %1115 = vperm.xlu0 %1114, %v436
          %v1116 = vpop.permute.xlu0 %1115
          %v1118 = vadd.f32 %v1076, %v1112
          %v1119 = vadd.f32 %v1078, %v1112
          %v1120 = vadd.f32 %v1082, %v1116
          %v1121 = vadd.f32 %v1084, %v1116
          %v1122 = vmax.f32 %v1106, %v1107
          %1123 = vmax.xlane.f32.xlu0 %v1122
          %v1124 = vpop.xlane.xlu0 %1123
          %v1125 = vmax.f32 %v1108, %v1109
          %1126 = vmax.xlane.f32.xlu0 %v1125
          %v1127 = vpop.xlane.xlu0 %1126
          %v1128 = vsub.f32 %v1106, %v1124
          %v1129 = vsub.f32 %v1107, %v1124
          %v1130 = vsub.f32 %v1108, %v1127
          %v1131 = vsub.f32 %v1109, %v1127
          %v1132 = vmul.f32 %v1128, 1.442695
          %v1133 = vpow.pop %v1132
          %v1134 = vmul.f32 %v1129, 1.442695
          %v1135 = vpow.pop %v1134
          %v1136 = vmul.f32 %v1130, 1.442695
          %v1137 = vpow.pop %v1136
          %v1138 = vmul.f32 %v1131, 1.442695
          %v1139 = vpow.pop %v1138
          %v1140 = vadd.f32 %v1133, %v1135
          %1141 = vadd.xlane.f32.xlu0 %v1140
          %v1142 = vpop.xlane.xlu0 %1141
          %v1143 = vadd.f32 %v1137, %v1139
          %1144 = vadd.xlane.f32.xlu0 %v1143
          %v1145 = vpop.xlane.xlu0 %1144
          %v1146 = vrcp.pop %v1142
          %v1147 = vrcp.pop %v1145
          %v1148 = vmul.f32 %v1133, %v1146
          %v1149 = vmul.f32 %v1135, %v1146
          %v1150 = vmul.f32 %v1137, %v1147
          %v1151 = vmul.f32 %v1139, %v1147
          %v1152 = vrot.slane %v1094, 4
          %v1153 = vmax.f32 %v1094, %v1152
          %v1154 = vrot.slane %v1153, 2
          %v1155 = vmax.f32 %v1153, %v1154
          %v1156 = vrot.slane %v1155, 1
          %v1157 = vmax.f32 %v1155, %v1156
          %v1158 = vrot.slane %v1095, 4
          %v1159 = vmax.f32 %v1095, %v1158
          %v1160 = vrot.slane %v1159, 2
          %v1161 = vmax.f32 %v1159, %v1160
          %v1162 = vrot.slane %v1161, 1
          %v1163 = vmax.f32 %v1161, %v1162
          %v1164 = vrot.slane %v1096, 4
          %v1165 = vmax.f32 %v1096, %v1164
          %v1166 = vrot.slane %v1165, 2
          %v1167 = vmax.f32 %v1165, %v1166
          %v1168 = vrot.slane %v1167, 1
          %v1169 = vmax.f32 %v1167, %v1168
          %v1170 = vrot.slane %v1097, 4
          %v1171 = vmax.f32 %v1097, %v1170
          %v1172 = vrot.slane %v1171, 2
          %v1173 = vmax.f32 %v1171, %v1172
          %v1174 = vrot.slane %v1173, 1
          %v1175 = vmax.f32 %v1173, %v1174
          %v1176 = vsub.f32 %v1094, %v1157
          %v1177 = vsub.f32 %v1095, %v1163
          %v1178 = vsub.f32 %v1096, %v1169
          %v1179 = vsub.f32 %v1097, %v1175
          %v1180 = vmul.f32 %v1176, 1.442695
          %v1181 = vpow.pop %v1180
          %v1182 = vmul.f32 %v1177, 1.442695
          %v1183 = vpow.pop %v1182
          %v1184 = vmul.f32 %v1178, 1.442695
          %v1185 = vpow.pop %v1184
          %v1186 = vmul.f32 %v1179, 1.442695
          %v1187 = vpow.pop %v1186
          %v1188 = vrot.slane %v1181, 4
          %v1189 = vadd.f32 %v1181, %v1188
          %v1190 = vrot.slane %v1189, 2
          %v1191 = vadd.f32 %v1189, %v1190
          %v1192 = vrot.slane %v1191, 1
          %v1193 = vadd.f32 %v1191, %v1192
          %v1194 = vrot.slane %v1183, 4
          %v1195 = vadd.f32 %v1183, %v1194
          %v1196 = vrot.slane %v1195, 2
          %v1197 = vadd.f32 %v1195, %v1196
          %v1198 = vrot.slane %v1197, 1
          %v1199 = vadd.f32 %v1197, %v1198
          %v1200 = vrot.slane %v1185, 4
          %v1201 = vadd.f32 %v1185, %v1200
          %v1202 = vrot.slane %v1201, 2
          %v1203 = vadd.f32 %v1201, %v1202
          %v1204 = vrot.slane %v1203, 1
          %v1205 = vadd.f32 %v1203, %v1204
          %v1206 = vrot.slane %v1187, 4
          %v1207 = vadd.f32 %v1187, %v1206
          %v1208 = vrot.slane %v1207, 2
          %v1209 = vadd.f32 %v1207, %v1208
          %v1210 = vrot.slane %v1209, 1
          %v1211 = vadd.f32 %v1209, %v1210
          %v1212 = vrcp.pop %v1193
          %v1213 = vrcp.pop %v1199
          %v1214 = vrcp.pop %v1205
          %v1215 = vrcp.pop %v1211
          %v1216 = vmul.f32 %v1181, %v1212
          %v1217 = vmul.f32 %v1183, %v1213
          %v1218 = vmul.f32 %v1185, %v1214
          %v1219 = vmul.f32 %v1187, %v1215
          %1220 = vmatprep.subr.mxu0 0.0
          %1221 = vmatpush1.xpose.msra.mxu0 0.0
          %1222 = vmatprep.subr.mxu0 0.0
          %1223 = vmatpush1.xpose.msra.mxu0 0.0
          %1224 = vmatprep.subr.mxu0 0.0
          %1225 = vmatpush1.xpose.msra.mxu0 0.0
          %1226 = vmatprep.subr.mxu0 0.0
          %1227 = vmatpush1.xpose.msra.mxu0 0.0
          %1228 = vmatprep.subr.mxu0 0.0
          %1229 = vmatpush1.xpose.msra.mxu0 0.0
          %1230 = vmatprep.subr.mxu0 0.0
          %1231 = vmatpush1.xpose.msra.mxu0 0.0
          %1232 = vmatprep.subr.mxu0 0.0
          %1233 = vmatpush1.xpose.msra.mxu0 0.0
          %1234 = vmatprep.subr.mxu0 0.0
          %1235 = vmatpush1.xpose.msra.mxu0 0.0
          %1236 = vmatprep.subr.mxu0 0.0
          %1237 = vmatpush1.xpose.msra.mxu0 0.0
          %1238 = vmatprep.subr.mxu0 0.0
          %1239 = vmatpush1.xpose.msra.mxu0 0.0
          %1240 = vmatprep.subr.mxu0 0.0
          %1241 = vmatpush1.xpose.msra.mxu0 0.0
          %1242 = vmatprep.subr.mxu0 0.0
          %1243 = vmatpush1.xpose.msra.mxu0 0.0
          %1244 = vmatprep.subr.mxu0 0.0
          %1245 = vmatpush1.xpose.msra.mxu0 0.0
          %1246 = vmatprep.subr.mxu0 0.0
          %1247 = vmatpush1.xpose.msra.mxu0 0.0
          %1248 = vmatprep.subr.mxu0 0.0
          %1249 = vmatpush1.xpose.msra.mxu0 0.0
          %1250 = vmatprep.subr.mxu0 %v1149
          %1251 = vmatpush1.xpose.msra.mxu0 %v1148
          %1252 = vmatprep.subr.mxu0 0.0
          %1253 = vmatpush2.xpose.msra.mxu0 0.0
          %1254 = vmatprep.subr.mxu0 0.0
          %1255 = vmatpush2.xpose.msra.mxu0 0.0
          %1256 = vmatprep.subr.mxu0 0.0
          %1257 = vmatpush2.xpose.msra.mxu0 0.0
          %1258 = vmatprep.subr.mxu0 0.0
          %1259 = vmatpush2.xpose.msra.mxu0 0.0
          %1260 = vmatprep.subr.mxu0 0.0
          %1261 = vmatpush2.xpose.msra.mxu0 0.0
          %1262 = vmatprep.subr.mxu0 0.0
          %1263 = vmatpush2.xpose.msra.mxu0 0.0
          %1264 = vmatprep.subr.mxu0 0.0
          %1265 = vmatpush2.xpose.msra.mxu0 0.0
          %1266 = vmatprep.subr.mxu0 0.0
          %1267 = vmatpush2.xpose.msra.mxu0 0.0
          %1268 = vmatprep.subr.mxu0 0.0
          %1269 = vmatpush2.xpose.msra.mxu0 0.0
          %1270 = vmatprep.subr.mxu0 0.0
          %1271 = vmatpush2.xpose.msra.mxu0 0.0
          %1272 = vmatprep.subr.mxu0 0.0
          %1273 = vmatpush2.xpose.msra.mxu0 0.0
          %1274 = vmatprep.subr.mxu0 0.0
          %1275 = vmatpush2.xpose.msra.mxu0 0.0
          %1276 = vmatprep.subr.mxu0 0.0
          %1277 = vmatpush2.xpose.msra.mxu0 0.0
          %1278 = vmatprep.subr.mxu0 0.0
          %1279 = vmatpush2.xpose.msra.mxu0 0.0
          %1280 = vmatprep.subr.mxu0 0.0
          %1281 = vmatpush2.xpose.msra.mxu0 0.0
          %1282 = vmatprep.subr.mxu0 0.0
          %1283 = vmatpush2.xpose.msra.mxu0 0.0
          %1284 = vmatprep.mubr.f32.mxu0 %v1119
          %1285 = vmatmul.mubr.f32.gmra.mxu0 %v1118
          %v1286 = vpop.f32.mrf.mxu0
          %v1287 = vadd.f32 0.0, %v1286
          %v1288 = vpop.f32.mrf.mxu0
          %1289 = vdwg.mxu0
          %1290 = vmatprep.subr.mxu0 0.0
          %1291 = vmatpush1.xpose.msra.mxu0 0.0
          %1292 = vmatprep.subr.mxu0 0.0
          %1293 = vmatpush1.xpose.msra.mxu0 0.0
          %1294 = vmatprep.subr.mxu0 0.0
          %1295 = vmatpush1.xpose.msra.mxu0 0.0
          %1296 = vmatprep.subr.mxu0 0.0
          %1297 = vmatpush1.xpose.msra.mxu0 0.0
          %1298 = vmatprep.subr.mxu0 0.0
          %1299 = vmatpush1.xpose.msra.mxu0 0.0
          %1300 = vmatprep.subr.mxu0 0.0
          %1301 = vmatpush1.xpose.msra.mxu0 0.0
          %1302 = vmatprep.subr.mxu0 0.0
          %1303 = vmatpush1.xpose.msra.mxu0 0.0
          %1304 = vmatprep.subr.mxu0 0.0
          %1305 = vmatpush1.xpose.msra.mxu0 0.0
          %1306 = vmatprep.subr.mxu0 0.0
          %1307 = vmatpush1.xpose.msra.mxu0 0.0
          %1308 = vmatprep.subr.mxu0 0.0
          %1309 = vmatpush1.xpose.msra.mxu0 0.0
          %1310 = vmatprep.subr.mxu0 0.0
          %1311 = vmatpush1.xpose.msra.mxu0 0.0
          %1312 = vmatprep.subr.mxu0 0.0
          %1313 = vmatpush1.xpose.msra.mxu0 0.0
          %1314 = vmatprep.subr.mxu0 0.0
          %1315 = vmatpush1.xpose.msra.mxu0 0.0
          %1316 = vmatprep.subr.mxu0 0.0
          %1317 = vmatpush1.xpose.msra.mxu0 0.0
          %1318 = vmatprep.subr.mxu0 0.0
          %1319 = vmatpush1.xpose.msra.mxu0 0.0
          %1320 = vmatprep.subr.mxu0 %v1151
          %1321 = vmatpush1.xpose.msra.mxu0 %v1150
          %1322 = vmatprep.subr.mxu0 0.0
          %1323 = vmatpush2.xpose.msra.mxu0 0.0
          %1324 = vmatprep.subr.mxu0 0.0
          %1325 = vmatpush2.xpose.msra.mxu0 0.0
          %1326 = vmatprep.subr.mxu0 0.0
          %1327 = vmatpush2.xpose.msra.mxu0 0.0
          %1328 = vmatprep.subr.mxu0 0.0
          %1329 = vmatpush2.xpose.msra.mxu0 0.0
          %1330 = vmatprep.subr.mxu0 0.0
          %1331 = vmatpush2.xpose.msra.mxu0 0.0
          %1332 = vmatprep.subr.mxu0 0.0
          %1333 = vmatpush2.xpose.msra.mxu0 0.0
          %1334 = vmatprep.subr.mxu0 0.0
          %1335 = vmatpush2.xpose.msra.mxu0 0.0
          %1336 = vmatprep.subr.mxu0 0.0
          %1337 = vmatpush2.xpose.msra.mxu0 0.0
          %1338 = vmatprep.subr.mxu0 0.0
          %1339 = vmatpush2.xpose.msra.mxu0 0.0
          %1340 = vmatprep.subr.mxu0 0.0
          %1341 = vmatpush2.xpose.msra.mxu0 0.0
          %1342 = vmatprep.subr.mxu0 0.0
          %1343 = vmatpush2.xpose.msra.mxu0 0.0
          %1344 = vmatprep.subr.mxu0 0.0
          %1345 = vmatpush2.xpose.msra.mxu0 0.0
          %1346 = vmatprep.subr.mxu0 0.0
          %1347 = vmatpush2.xpose.msra.mxu0 0.0
          %1348 = vmatprep.subr.mxu0 0.0
          %1349 = vmatpush2.xpose.msra.mxu0 0.0
          %1350 = vmatprep.subr.mxu0 0.0
          %1351 = vmatpush2.xpose.msra.mxu0 0.0
          %1352 = vmatprep.subr.mxu0 0.0
          %1353 = vmatpush2.xpose.msra.mxu0 0.0
          %1354 = vmatprep.mubr.f32.mxu0 %v1121
          %1355 = vmatmul.mubr.f32.gmra.mxu0 %v1120
          %v1356 = vpop.f32.mrf.mxu0
          %v1357 = vadd.f32 0.0, %v1356
          %v1358 = vpop.f32.mrf.mxu0
          %1359 = vdwg.mxu0
          %v1361 = vsel %vm713, %v1287, 0
          %1363 = vmatprep.subr.mxu0 0.0
          %1364 = vmatpush1.msra.mxu0 0.0
          %1365 = vmatprep.subr.mxu0 0.0
          %1366 = vmatpush1.msra.mxu0 0.0
          %1367 = vmatprep.subr.mxu0 0.0
          %1368 = vmatpush1.msra.mxu0 0.0
          %1369 = vmatprep.subr.mxu0 0.0
          %1370 = vmatpush1.msra.mxu0 0.0
          %1371 = vmatprep.subr.mxu0 0.0
          %1372 = vmatpush1.msra.mxu0 0.0
          %1373 = vmatprep.subr.mxu0 0.0
          %1374 = vmatpush1.msra.mxu0 0.0
          %1375 = vmatprep.subr.mxu0 0.0
          %1376 = vmatpush1.msra.mxu0 0.0
          %1377 = vmatprep.subr.mxu0 0.0
          %1378 = vmatpush1.msra.mxu0 0.0
          %1379 = vmatprep.subr.mxu0 0.0
          %1380 = vmatpush1.msra.mxu0 0.0
          %1381 = vmatprep.subr.mxu0 0.0
          %1382 = vmatpush1.msra.mxu0 0.0
          %1383 = vmatprep.subr.mxu0 0.0
          %1384 = vmatpush1.msra.mxu0 0.0
          %1385 = vmatprep.subr.mxu0 0.0
          %1386 = vmatpush1.msra.mxu0 0.0
          %1387 = vmatprep.subr.mxu0 0.0
          %1388 = vmatpush1.msra.mxu0 0.0
          %1389 = vmatprep.subr.mxu0 0.0
          %1390 = vmatpush1.msra.mxu0 0.0
          %1391 = vmatprep.subr.mxu0 0.0
          %1392 = vmatpush1.msra.mxu0 0.0
          %1393 = vmatprep.subr.mxu0 %v1217
          %1394 = vmatpush1.msra.mxu0 %v1216
          %1395 = vmatprep.subr.mxu0 0.0
          %1396 = vmatpush2.msra.mxu0 0.0
          %1397 = vmatprep.subr.mxu0 0.0
          %1398 = vmatpush2.msra.mxu0 0.0
          %1399 = vmatprep.subr.mxu0 0.0
          %1400 = vmatpush2.msra.mxu0 0.0
          %1401 = vmatprep.subr.mxu0 0.0
          %1402 = vmatpush2.msra.mxu0 0.0
          %1403 = vmatprep.subr.mxu0 0.0
          %1404 = vmatpush2.msra.mxu0 0.0
          %1405 = vmatprep.subr.mxu0 0.0
          %1406 = vmatpush2.msra.mxu0 0.0
          %1407 = vmatprep.subr.mxu0 0.0
          %1408 = vmatpush2.msra.mxu0 0.0
          %1409 = vmatprep.subr.mxu0 0.0
          %1410 = vmatpush2.msra.mxu0 0.0
          %1411 = vmatprep.subr.mxu0 0.0
          %1412 = vmatpush2.msra.mxu0 0.0
          %1413 = vmatprep.subr.mxu0 0.0
          %1414 = vmatpush2.msra.mxu0 0.0
          %1415 = vmatprep.subr.mxu0 0.0
          %1416 = vmatpush2.msra.mxu0 0.0
          %1417 = vmatprep.subr.mxu0 0.0
          %1418 = vmatpush2.msra.mxu0 0.0
          %1419 = vmatprep.subr.mxu0 0.0
          %1420 = vmatpush2.msra.mxu0 0.0
          %1421 = vmatprep.subr.mxu0 0.0
          %1422 = vmatpush2.msra.mxu0 0.0
          %1423 = vmatprep.subr.mxu0 0.0
          %1424 = vmatpush2.msra.mxu0 0.0
          %1425 = vmatprep.subr.mxu0 0.0
          %1426 = vmatpush2.msra.mxu0 0.0
          %1427 = vmatprep.mubr.f32.mxu0 0.0
          %1428 = vmatmul.mubr.f32.gmra.mxu0 %v1361
          %v1429 = vpop.f32.mrf.mxu0
          %v1430 = vadd.f32 0.0, %v1429
          %v1431 = vpop.f32.mrf.mxu0
          %v1432 = vadd.f32 0.0, %v1431
          %1433 = vdwg.mxu0
          %v1435 = vsel %vm713, %v1357, 0
          %1437 = vmatprep.subr.mxu0 0.0
          %1438 = vmatpush1.msra.mxu0 0.0
          %1439 = vmatprep.subr.mxu0 0.0
          %1440 = vmatpush1.msra.mxu0 0.0
          %1441 = vmatprep.subr.mxu0 0.0
          %1442 = vmatpush1.msra.mxu0 0.0
          %1443 = vmatprep.subr.mxu0 0.0
          %1444 = vmatpush1.msra.mxu0 0.0
          %1445 = vmatprep.subr.mxu0 0.0
          %1446 = vmatpush1.msra.mxu0 0.0
          %1447 = vmatprep.subr.mxu0 0.0
          %1448 = vmatpush1.msra.mxu0 0.0
          %1449 = vmatprep.subr.mxu0 0.0
          %1450 = vmatpush1.msra.mxu0 0.0
          %1451 = vmatprep.subr.mxu0 0.0
          %1452 = vmatpush1.msra.mxu0 0.0
          %1453 = vmatprep.subr.mxu0 0.0
          %1454 = vmatpush1.msra.mxu0 0.0
          %1455 = vmatprep.subr.mxu0 0.0
          %1456 = vmatpush1.msra.mxu0 0.0
          %1457 = vmatprep.subr.mxu0 0.0
          %1458 = vmatpush1.msra.mxu0 0.0
          %1459 = vmatprep.subr.mxu0 0.0
          %1460 = vmatpush1.msra.mxu0 0.0
          %1461 = vmatprep.subr.mxu0 0.0
          %1462 = vmatpush1.msra.mxu0 0.0
          %1463 = vmatprep.subr.mxu0 0.0
          %1464 = vmatpush1.msra.mxu0 0.0
          %1465 = vmatprep.subr.mxu0 0.0
          %1466 = vmatpush1.msra.mxu0 0.0
          %1467 = vmatprep.subr.mxu0 %v1219
          %1468 = vmatpush1.msra.mxu0 %v1218
          %1469 = vmatprep.subr.mxu0 0.0
          %1470 = vmatpush2.msra.mxu0 0.0
          %1471 = vmatprep.subr.mxu0 0.0
          %1472 = vmatpush2.msra.mxu0 0.0
          %1473 = vmatprep.subr.mxu0 0.0
          %1474 = vmatpush2.msra.mxu0 0.0
          %1475 = vmatprep.subr.mxu0 0.0
          %1476 = vmatpush2.msra.mxu0 0.0
          %1477 = vmatprep.subr.mxu0 0.0
          %1478 = vmatpush2.msra.mxu0 0.0
          %1479 = vmatprep.subr.mxu0 0.0
          %1480 = vmatpush2.msra.mxu0 0.0
          %1481 = vmatprep.subr.mxu0 0.0
          %1482 = vmatpush2.msra.mxu0 0.0
          %1483 = vmatprep.subr.mxu0 0.0
          %1484 = vmatpush2.msra.mxu0 0.0
          %1485 = vmatprep.subr.mxu0 0.0
          %1486 = vmatpush2.msra.mxu0 0.0
          %1487 = vmatprep.subr.mxu0 0.0
          %1488 = vmatpush2.msra.mxu0 0.0
          %1489 = vmatprep.subr.mxu0 0.0
          %1490 = vmatpush2.msra.mxu0 0.0
          %1491 = vmatprep.subr.mxu0 0.0
          %1492 = vmatpush2.msra.mxu0 0.0
          %1493 = vmatprep.subr.mxu0 0.0
          %1494 = vmatpush2.msra.mxu0 0.0
          %1495 = vmatprep.subr.mxu0 0.0
          %1496 = vmatpush2.msra.mxu0 0.0
          %1497 = vmatprep.subr.mxu0 0.0
          %1498 = vmatpush2.msra.mxu0 0.0
          %1499 = vmatprep.subr.mxu0 0.0
          %1500 = vmatpush2.msra.mxu0 0.0
          %1501 = vmatprep.mubr.f32.mxu0 0.0
          %1502 = vmatmul.mubr.f32.gmra.mxu0 %v1435
          %v1503 = vpop.f32.mrf.mxu0
          %v1504 = vadd.f32 0.0, %v1503
          %v1505 = vpop.f32.mrf.mxu0
          %v1506 = vadd.f32 0.0, %v1505
          %1507 = vdwg.mxu0
          %s1508 = scalar_lea.vmem [#allocation7], 112
          %v1509 = vld [vmem:[%s1508] sm:$0xff]
          %v1510 = vld [vmem:[%s1508 + $0x8] sm:$0xff]
          %1511 = vset.pattern.permute.xlu0 7
          %1512 = vperm.xlu0 %1511, %v435
          %v1513 = vpop.permute.xlu0 %1512
          %1515 = vset.pattern.permute.xlu0 7
          %1516 = vperm.xlu0 %1515, %v436
          %v1517 = vpop.permute.xlu0 %1516
          %v1520 = vsel %vm315, %v1509, 0
          %v1523 = vsel %vm315, %v1510, 0
          %1525 = vmatprep.subr.mxu0 0.0
          %1526 = vmatpush1.msra.mxu0 0.0
          %1527 = vmatprep.subr.mxu0 0.0
          %1528 = vmatpush1.msra.mxu0 0.0
          %1529 = vmatprep.subr.mxu0 0.0
          %1530 = vmatpush1.msra.mxu0 0.0
          %1531 = vmatprep.subr.mxu0 0.0
          %1532 = vmatpush1.msra.mxu0 0.0
          %1533 = vmatprep.subr.mxu0 0.0
          %1534 = vmatpush1.msra.mxu0 0.0
          %1535 = vmatprep.subr.mxu0 0.0
          %1536 = vmatpush1.msra.mxu0 0.0
          %1537 = vmatprep.subr.mxu0 0.0
          %1538 = vmatpush1.msra.mxu0 0.0
          %1539 = vmatprep.subr.mxu0 0.0
          %1540 = vmatpush1.msra.mxu0 0.0
          %1541 = vmatprep.subr.mxu0 0.0
          %1542 = vmatpush1.msra.mxu0 0.0
          %1543 = vmatprep.subr.mxu0 0.0
          %1544 = vmatpush1.msra.mxu0 0.0
          %1545 = vmatprep.subr.mxu0 0.0
          %1546 = vmatpush1.msra.mxu0 0.0
          %1547 = vmatprep.subr.mxu0 0.0
          %1548 = vmatpush1.msra.mxu0 0.0
          %1549 = vmatprep.subr.mxu0 0.0
          %1550 = vmatpush1.msra.mxu0 0.0
          %1551 = vmatprep.subr.mxu0 0.0
          %1552 = vmatpush1.msra.mxu0 0.0
          %1553 = vmatprep.subr.mxu0 %v1506
          %1554 = vmatpush1.msra.mxu0 %v1504
          %1555 = vmatprep.subr.mxu0 %v1432
          %1556 = vmatpush1.msra.mxu0 %v1430
          %1557 = vmatprep.subr.mxu0 0.0
          %1558 = vmatpush2.msra.mxu0 0.0
          %1559 = vmatprep.subr.mxu0 0.0
          %1560 = vmatpush2.msra.mxu0 0.0
          %1561 = vmatprep.subr.mxu0 0.0
          %1562 = vmatpush2.msra.mxu0 0.0
          %1563 = vmatprep.subr.mxu0 0.0
          %1564 = vmatpush2.msra.mxu0 0.0
          %1565 = vmatprep.subr.mxu0 0.0
          %1566 = vmatpush2.msra.mxu0 0.0
          %1567 = vmatprep.subr.mxu0 0.0
          %1568 = vmatpush2.msra.mxu0 0.0
          %1569 = vmatprep.subr.mxu0 0.0
          %1570 = vmatpush2.msra.mxu0 0.0
          %1571 = vmatprep.subr.mxu0 0.0
          %1572 = vmatpush2.msra.mxu0 0.0
          %1573 = vmatprep.subr.mxu0 0.0
          %1574 = vmatpush2.msra.mxu0 0.0
          %1575 = vmatprep.subr.mxu0 0.0
          %1576 = vmatpush2.msra.mxu0 0.0
          %1577 = vmatprep.subr.mxu0 0.0
          %1578 = vmatpush2.msra.mxu0 0.0
          %1579 = vmatprep.subr.mxu0 0.0
          %1580 = vmatpush2.msra.mxu0 0.0
          %1581 = vmatprep.subr.mxu0 0.0
          %1582 = vmatpush2.msra.mxu0 0.0
          %1583 = vmatprep.subr.mxu0 0.0
          %1584 = vmatpush2.msra.mxu0 0.0
          %1585 = vmatprep.subr.mxu0 0.0
          %1586 = vmatpush2.msra.mxu0 0.0
          %1587 = vmatprep.subr.mxu0 0.0
          %1588 = vmatpush2.msra.mxu0 0.0
          %1589 = vmatprep.mubr.f32.mxu0 0.0
          %1590 = vmatmul.mubr.f32.gmra.mxu0 %v1520
          %v1591 = vpop.f32.mrf.mxu0
          %v1592 = vadd.f32 %v1513, %v1591
          %v1593 = vpop.f32.mrf.mxu0
          %v1594 = vadd.f32 %v1513, %v1593
          %1595 = vmatprep.mubr.f32.mxu0 0.0
          %1596 = vmatmul.mubr.f32.gmra.mxu0 %v1523
          %v1597 = vpop.f32.mrf.mxu0
          %v1598 = vadd.f32 %v1517, %v1597
          %v1599 = vpop.f32.mrf.mxu0
          %v1600 = vadd.f32 %v1517, %v1599
          %1601 = vdwg.mxu0
          %v1602 = vadd.f32 %v1592, %v305
          %v1603 = vadd.f32 %v1594, %v306
          %v1604 = vadd.f32 %v1598, %v307
          %v1605 = vadd.f32 %v1600, %v308
          %v1606 = vadd.f32 %v956, %v1602
          %v1607 = vadd.f32 %v957, %v1603
          %v1608 = vadd.f32 %v958, %v1604
          %v1609 = vadd.f32 %v959, %v1605
          %s1610 = scalar_lea.vmem [#allocation7], 128
          %v1611 = vld [vmem:[%s1610] sm:$0xff]
          %v1612 = vld [vmem:[%s1610 + $0x8] sm:$0xff]
          %1613 = vset.pattern.permute.xlu0 8
          %1614 = vperm.xlu0 %1613, %v435
          %v1615 = vpop.permute.xlu0 %1614
          %1617 = vset.pattern.permute.xlu0 8
          %1618 = vperm.xlu0 %1617, %v436
          %v1619 = vpop.permute.xlu0 %1618
          %v1622 = vsel %vm315, %v1611, 0
          %v1625 = vsel %vm315, %v1612, 0
          %1627 = vmatprep.subr.mxu0 0.0
          %1628 = vmatpush1.msra.mxu0 0.0
          %1629 = vmatprep.subr.mxu0 0.0
          %1630 = vmatpush1.msra.mxu0 0.0
          %1631 = vmatprep.subr.mxu0 0.0
          %1632 = vmatpush1.msra.mxu0 0.0
          %1633 = vmatprep.subr.mxu0 0.0
          %1634 = vmatpush1.msra.mxu0 0.0
          %1635 = vmatprep.subr.mxu0 0.0
          %1636 = vmatpush1.msra.mxu0 0.0
          %1637 = vmatprep.subr.mxu0 0.0
          %1638 = vmatpush1.msra.mxu0 0.0
          %1639 = vmatprep.subr.mxu0 0.0
          %1640 = vmatpush1.msra.mxu0 0.0
          %1641 = vmatprep.subr.mxu0 0.0
          %1642 = vmatpush1.msra.mxu0 0.0
          %1643 = vmatprep.subr.mxu0 0.0
          %1644 = vmatpush1.msra.mxu0 0.0
          %1645 = vmatprep.subr.mxu0 0.0
          %1646 = vmatpush1.msra.mxu0 0.0
          %1647 = vmatprep.subr.mxu0 0.0
          %1648 = vmatpush1.msra.mxu0 0.0
          %1649 = vmatprep.subr.mxu0 0.0
          %1650 = vmatpush1.msra.mxu0 0.0
          %1651 = vmatprep.subr.mxu0 0.0
          %1652 = vmatpush1.msra.mxu0 0.0
          %1653 = vmatprep.subr.mxu0 0.0
          %1654 = vmatpush1.msra.mxu0 0.0
          %1655 = vmatprep.subr.mxu0 %v1609
          %1656 = vmatpush1.msra.mxu0 %v1608
          %1657 = vmatprep.subr.mxu0 %v1607
          %1658 = vmatpush1.msra.mxu0 %v1606
          %1659 = vmatprep.subr.mxu0 0.0
          %1660 = vmatpush2.msra.mxu0 0.0
          %1661 = vmatprep.subr.mxu0 0.0
          %1662 = vmatpush2.msra.mxu0 0.0
          %1663 = vmatprep.subr.mxu0 0.0
          %1664 = vmatpush2.msra.mxu0 0.0
          %1665 = vmatprep.subr.mxu0 0.0
          %1666 = vmatpush2.msra.mxu0 0.0
          %1667 = vmatprep.subr.mxu0 0.0
          %1668 = vmatpush2.msra.mxu0 0.0
          %1669 = vmatprep.subr.mxu0 0.0
          %1670 = vmatpush2.msra.mxu0 0.0
          %1671 = vmatprep.subr.mxu0 0.0
          %1672 = vmatpush2.msra.mxu0 0.0
          %1673 = vmatprep.subr.mxu0 0.0
          %1674 = vmatpush2.msra.mxu0 0.0
          %1675 = vmatprep.subr.mxu0 0.0
          %1676 = vmatpush2.msra.mxu0 0.0
          %1677 = vmatprep.subr.mxu0 0.0
          %1678 = vmatpush2.msra.mxu0 0.0
          %1679 = vmatprep.subr.mxu0 0.0
          %1680 = vmatpush2.msra.mxu0 0.0
          %1681 = vmatprep.subr.mxu0 0.0
          %1682 = vmatpush2.msra.mxu0 0.0
          %1683 = vmatprep.subr.mxu0 0.0
          %1684 = vmatpush2.msra.mxu0 0.0
          %1685 = vmatprep.subr.mxu0 0.0
          %1686 = vmatpush2.msra.mxu0 0.0
          %1687 = vmatprep.subr.mxu0 0.0
          %1688 = vmatpush2.msra.mxu0 0.0
          %1689 = vmatprep.subr.mxu0 0.0
          %1690 = vmatpush2.msra.mxu0 0.0
          %1691 = vmatprep.mubr.f32.mxu0 0.0
          %1692 = vmatmul.mubr.f32.gmra.mxu0 %v1622
          %v1693 = vpop.f32.mrf.mxu0
          %v1694 = vadd.f32 %v1615, %v1693
          %v1695 = vpop.f32.mrf.mxu0
          %v1696 = vadd.f32 %v1615, %v1695
          %1697 = vmatprep.mubr.f32.mxu0 0.0
          %1698 = vmatmul.mubr.f32.gmra.mxu0 %v1625
          %v1699 = vpop.f32.mrf.mxu0
          %v1700 = vadd.f32 %v1619, %v1699
          %v1701 = vpop.f32.mrf.mxu0
          %v1702 = vadd.f32 %v1619, %v1701
          %1703 = vdwg.mxu0
          %v1704 = vmax.f32 %v1694, 0.0
          %v1705 = vmax.f32 %v1696, 0.0
          %v1706 = vmax.f32 %v1700, 0.0
          %v1707 = vmax.f32 %v1702, 0.0
          %s1708 = scalar_lea.vmem [#allocation7], 144
          %v1709 = vld [vmem:[%s1708] sm:$0xff]
          %v1710 = vld [vmem:[%s1708 + $0x8] sm:$0xff]
          %1711 = vset.pattern.permute.xlu0 9
          %1712 = vperm.xlu0 %1711, %v435
          %v1713 = vpop.permute.xlu0 %1712
          %1715 = vset.pattern.permute.xlu0 9
          %1716 = vperm.xlu0 %1715, %v436
          %v1717 = vpop.permute.xlu0 %1716
          %v1720 = vsel %vm315, %v1709, 0
          %v1723 = vsel %vm315, %v1710, 0
          %1725 = vmatprep.subr.mxu0 0.0
          %1726 = vmatpush1.msra.mxu0 0.0
          %1727 = vmatprep.subr.mxu0 0.0
          %1728 = vmatpush1.msra.mxu0 0.0
          %1729 = vmatprep.subr.mxu0 0.0
          %1730 = vmatpush1.msra.mxu0 0.0
          %1731 = vmatprep.subr.mxu0 0.0
          %1732 = vmatpush1.msra.mxu0 0.0
          %1733 = vmatprep.subr.mxu0 0.0
          %1734 = vmatpush1.msra.mxu0 0.0
          %1735 = vmatprep.subr.mxu0 0.0
          %1736 = vmatpush1.msra.mxu0 0.0
          %1737 = vmatprep.subr.mxu0 0.0
          %1738 = vmatpush1.msra.mxu0 0.0
          %1739 = vmatprep.subr.mxu0 0.0
          %1740 = vmatpush1.msra.mxu0 0.0
          %1741 = vmatprep.subr.mxu0 0.0
          %1742 = vmatpush1.msra.mxu0 0.0
          %1743 = vmatprep.subr.mxu0 0.0
          %1744 = vmatpush1.msra.mxu0 0.0
          %1745 = vmatprep.subr.mxu0 0.0
          %1746 = vmatpush1.msra.mxu0 0.0
          %1747 = vmatprep.subr.mxu0 0.0
          %1748 = vmatpush1.msra.mxu0 0.0
          %1749 = vmatprep.subr.mxu0 0.0
          %1750 = vmatpush1.msra.mxu0 0.0
          %1751 = vmatprep.subr.mxu0 0.0
          %1752 = vmatpush1.msra.mxu0 0.0
          %1753 = vmatprep.subr.mxu0 %v1707
          %1754 = vmatpush1.msra.mxu0 %v1706
          %1755 = vmatprep.subr.mxu0 %v1705
          %1756 = vmatpush1.msra.mxu0 %v1704
          %1757 = vmatprep.subr.mxu0 0.0
          %1758 = vmatpush2.msra.mxu0 0.0
          %1759 = vmatprep.subr.mxu0 0.0
          %1760 = vmatpush2.msra.mxu0 0.0
          %1761 = vmatprep.subr.mxu0 0.0
          %1762 = vmatpush2.msra.mxu0 0.0
          %1763 = vmatprep.subr.mxu0 0.0
          %1764 = vmatpush2.msra.mxu0 0.0
          %1765 = vmatprep.subr.mxu0 0.0
          %1766 = vmatpush2.msra.mxu0 0.0
          %1767 = vmatprep.subr.mxu0 0.0
          %1768 = vmatpush2.msra.mxu0 0.0
          %1769 = vmatprep.subr.mxu0 0.0
          %1770 = vmatpush2.msra.mxu0 0.0
          %1771 = vmatprep.subr.mxu0 0.0
          %1772 = vmatpush2.msra.mxu0 0.0
          %1773 = vmatprep.subr.mxu0 0.0
          %1774 = vmatpush2.msra.mxu0 0.0
          %1775 = vmatprep.subr.mxu0 0.0
          %1776 = vmatpush2.msra.mxu0 0.0
          %1777 = vmatprep.subr.mxu0 0.0
          %1778 = vmatpush2.msra.mxu0 0.0
          %1779 = vmatprep.subr.mxu0 0.0
          %1780 = vmatpush2.msra.mxu0 0.0
          %1781 = vmatprep.subr.mxu0 0.0
          %1782 = vmatpush2.msra.mxu0 0.0
          %1783 = vmatprep.subr.mxu0 0.0
          %1784 = vmatpush2.msra.mxu0 0.0
          %1785 = vmatprep.subr.mxu0 0.0
          %1786 = vmatpush2.msra.mxu0 0.0
          %1787 = vmatprep.subr.mxu0 0.0
          %1788 = vmatpush2.msra.mxu0 0.0
          %1789 = vmatprep.mubr.f32.mxu0 0.0
          %1790 = vmatmul.mubr.f32.gmra.mxu0 %v1720
          %v1791 = vpop.f32.mrf.mxu0
          %v1792 = vadd.f32 %v1713, %v1791
          %v1793 = vpop.f32.mrf.mxu0
          %v1794 = vadd.f32 %v1713, %v1793
          %1795 = vmatprep.mubr.f32.mxu0 0.0
          %1796 = vmatmul.mubr.f32.gmra.mxu0 %v1723
          %v1797 = vpop.f32.mrf.mxu0
          %v1798 = vadd.f32 %v1717, %v1797
          %v1799 = vpop.f32.mrf.mxu0
          %v1800 = vadd.f32 %v1717, %v1799
          %1801 = vdwg.mxu0
          %v1802 = vadd.f32 %v1792, %v1606
          %v1803 = vadd.f32 %v1794, %v1607
          %v1804 = vadd.f32 %v1798, %v1608
          %v1805 = vadd.f32 %v1800, %v1609
          %s1806 = smul.addr %s296, 8
          %s1807 = scalar_lea.vmem %s286, %s1806 [#allocation10]
          %1808 = vst [vmem:[%s1807] sm:$0xff] %v1802
          %1809 = vst [vmem:[%s1807 + $0x8] sm:$0xff] %v1803
          %1810 = vst [vmem:[%s1807 + $0x10] sm:$0xff] %v1804
          %1811 = vst [vmem:[%s1807 + $0x18] sm:$0xff] %v1805
        $region57: #{tpu_custom_call.1} parent=35 // loop_footer
          %s295 = sadd.s32 1, %s291
        $region58: #{tpu_custom_call.1} parent=35 // loop_footer_branch
          %290 = sbr.rel target = $region54
        $region59: #{tpu_custom_call.1} parent=35 // loop_exit
          _
        %s1812 = sand.u32 %s127, 1
        %s1813 = scalar_lea.sflag [#allocation4], %s1812
        %s1814 = sand.u32 %s127, 1
        %s1815 = smul.addr %s1814, 64
        %s1816 = scalar_lea.vmem [#allocation10], %s1815
        // Predicated region
        $region60: #{tpu_custom_call.1} parent=35 // pred_check
          %p1817 = pneg %p137
        $region61: #{tpu_custom_call.1} parent=35 // pred_check_branch
          %1819 = sbr.rel (%p1817) target = $region63
        $region62: #{tpu_custom_call.1} parent=35 // pred_region
          %s1820 = smul.u32 2, %s25
          %s1822 = ssub.s32 1024, 1024
          %1823 = vsyncadd %s1813, %s1822
          %s1824 = smul.addr %s1820, 4
          %s1825 = smul.addr %s1824, 128
          %s1826 = scalar_lea.hbm %s4, %s1825
          %s1827 = sshll.u32 %s1816, 4
          %s1828 = int_to_ptr.vmem [resolvable:$true] %s1827
          %1833 = dma.vmem_to_hbm [thread:$0]  %s1828, 1024, %s1826, %s1813, 256, 256, 16
        $region63: #{tpu_custom_call.1} parent=35 // pred_fallthru
          _
      $region36: #{tpu_custom_call.1} parent=5 // pred_fallthru
        _
      %p1834 = scmp.le.s32.totalorder 2, %s20
      // Predicated region
      $region64: #{tpu_custom_call.1} parent=5 // pred_check
        %p1835 = pneg %p1834
      $region65: #{tpu_custom_call.1} parent=5 // pred_check_branch
        %1837 = sbr.rel (%p1835) target = $region67
      $region66: #{tpu_custom_call.1} parent=5 // pred_region
        %s1838 = ssub.s32 %s20, 2
        // Predicated region
        $region68: #{tpu_custom_call.1} parent=66 // pred_check
          %p1839 = pneg %p143
        $region69: #{tpu_custom_call.1} parent=66 // pred_check_branch
          %1841 = sbr.rel (%p1839) target = $region71
        $region70: #{tpu_custom_call.1} parent=66 // pred_region
          %s1842 = sand.u32 %s128, 1
          %s1843 = scalar_lea.sflag [#allocation4], %s1842
          %s1844 = sand.u32 %s128, 1
          %s1845 = smul.addr %s1844, 64
          %s1846 = scalar_lea.vmem [#allocation10], %s1845
          %1847 = dma.done %s1843, 1024
        $region71: #{tpu_custom_call.1} parent=66 // pred_fallthru
          _
      $region67: #{tpu_custom_call.1} parent=5 // pred_fallthru
        _
    $region6: #{tpu_custom_call.1} parent=1 // loop_footer
      %s24 = sadd.s32 1, %s20
    $region7: #{tpu_custom_call.1} parent=1 // loop_footer_branch
      %19 = sbr.rel target = $region3
    $region8: #{tpu_custom_call.1} parent=1 // loop_exit
      _
    %1848 = vsyncpa [#allocation3], 1
    %s1849 = scalar_lea.sflag [#allocation3], 1
    %1850 = vsyncpa %s1849, 1
    %1851 = vsyncpa [#allocation6], 1
    %s1852 = scalar_lea.sflag [#allocation6], 1
    %1853 = vsyncpa %s1852, 1
    %1854 = vsyncpa [#allocation9], 1
    %1855 = vsyncpa [#allocation4], 1
    %s1856 = scalar_lea.sflag [#allocation4], 1
    %1857 = vsyncpa %s1856, 1

</llo_original>
